<compile_context>
chip_gen: v5e
topology: v5e:2x2
jax: 0.10.0
libtpu: 0.0.40
codegen_flags: <defaults>
</compile_context>

<pallas_src>
import numpy as np
import jax
import jax.numpy as jnp
from jax.experimental import pallas as pl
from jax.experimental.pallas import tpu as pltpu

# ---------------------------------------------------------------------------
# Packed-parameter layout (per channel, 59 f32 values):
#   softplus(matrix0) (3x1) : idx  0.. 2        sw0[j]
#   softplus(matrix1) (3x3) : idx  3..11        sw1[j,k] at 3 + j*3 + k
#   softplus(matrix2) (3x3) : idx 12..20
#   softplus(matrix3) (3x3) : idx 21..29
#   softplus(matrix4) (1x3) : idx 30..32        sw4[k]
#   bias0..bias3      (3,)  : idx 33..44
#   bias4             (1,)  : idx 45
#   tanh(factor0..3)  (3,)  : idx 46..57
#   median (quantiles[:,0,1]): idx 58
# ---------------------------------------------------------------------------
NPARAM = 59
LIKELIHOOD_BOUND = 1e-9
LANE = 512            # lane-dense last block dim (multiple of 128)
MAX_BLOCK_ROWS = 64   # 64 x 512 f32 = 128 KiB per input block


def _eb_kernel(params_ref, x_ref, xq_ref, lik_ref):
    c = pl.program_id(1)

    # Hoist ALL per-channel SMEM scalars once (logits_cumulative is traced
    # twice below; without this the scalar loads/broadcasts are doubled).
    p = [params_ref[c, i] for i in range(NPARAM)]
    median = p[58]

    x = x_ref[...]  # (block_rows, LANE) float32, sublane/lane dense

    # quantize-dequantize path of forward():
    #   x = round(clamp(x - median, -128, 127)) + median
    xq = jnp.round(jnp.clip(x - median, -128.0, 127.0)) + median
    xq_ref[...] = xq

    def logits_cumulative(v):
        # layer 0: 1 -> 3
        h = []
        for j in range(3):
            hj = p[0 + j] * v + p[33 + j]
            h.append(hj + p[46 + j] * jnp.tanh(hj))
        # layers 1..3: 3 -> 3
        for li in range(3):
            w_base = 3 + li * 9
            b_base = 36 + li * 3
            f_base = 49 + li * 3
            hn = []
            for j in range(3):
                s = (p[w_base + j * 3 + 0] * h[0]
                     + p[w_base + j * 3 + 1] * h[1]
                     + p[w_base + j * 3 + 2] * h[2]
                     + p[b_base + j])
                hn.append(s + p[f_base + j] * jnp.tanh(s))
            h = hn
        # layer 4: 3 -> 1 (no factor)
        return p[30] * h[0] + p[31] * h[1] + p[32] * h[2] + p[45]

    lower = logits_cumulative(xq - 0.5)
    upper = logits_cumulative(xq + 0.5)
    lik = jax.nn.sigmoid(upper) - jax.nn.sigmoid(lower)
    # LowerBound forward == torch.max(x, bound)
    lik_ref[...] = jnp.maximum(lik, LIKELIHOOD_BOUND)


def entropy_bottleneck_forward(x, packed_params, *, lane=LANE,
                               max_block_rows=MAX_BLOCK_ROWS):
    """x: (N, C, H, W) float32. Returns (x_out, likelihood), both (N, C, H, W)."""
    N, C, H, W = x.shape
    HW = H * W

    # Re-view each (n, c) spatial slab as (rows, lane) so vregs are
    # sublane-dense; block_rows is a multiple of 8 (up to 64).
    rows = -(-HW // lane)
    block_rows = min(max_block_rows, ((rows + 7) // 8) * 8)
    rows_p = -(-rows // block_rows) * block_rows
    HWp = rows_p * lane

    x3 = x.reshape(N, C, HW).astype(jnp.float32)        # pure view, no permute
    if HWp != HW:
        x3 = jnp.pad(x3, ((0, 0), (0, 0), (0, HWp - HW)))
    x4 = x3.reshape(N, C, rows_p, lane)

    grid = (N, C, rows_p // block_rows)
    blk = pl.BlockSpec((None, None, block_rows, lane),
                       lambda n, c, t: (n, c, t, 0))

    xq4, lik4 = pl.pallas_call(
        _eb_kernel,
        out_shape=(
            jax.ShapeDtypeStruct((N, C, rows_p, lane), jnp.float32),
            jax.ShapeDtypeStruct((N, C, rows_p, lane), jnp.float32),
        ),
        grid=grid,
        in_specs=[
            pl.BlockSpec(memory_space=pltpu.SMEM),  # (C, 59) param table
            blk,                                    # sublane/lane-dense slab
        ],
        out_specs=(blk, blk),
        compiler_params=pltpu.CompilerParams(
            dimension_semantics=("parallel", "parallel", "parallel")),
    )(packed_params, x4)

    xq = xq4.reshape(N, C, HWp)[:, :, :HW].reshape(N, C, H, W)
    lik = lik4.reshape(N, C, HWp)[:, :, :HW].reshape(N, C, H, W)
    return xq, lik


# ---------------------------------------------------------------------------
# Parameter construction (deterministic, mirrors EntropyBottleneck.__init__)
# ---------------------------------------------------------------------------
def make_params(channels, filters=(3, 3, 3, 3), init_scale=10.0, seed=0):
    filters_full = (1,) + tuple(filters) + (1,)
    scale = init_scale ** (1.0 / (len(filters) + 1))
    matrices, biases, factors = [], [], []
    key = jax.random.PRNGKey(seed)
    for i in range(len(filters) + 1):
        init = float(np.log(np.expm1(1.0 / scale / filters_full[i + 1])))
        matrices.append(jnp.full(
            (channels, filters_full[i + 1], filters_full[i]), init, jnp.float32))
        key, sub = jax.random.split(key)
        biases.append(jax.random.uniform(
            sub, (channels, filters_full[i + 1], 1), jnp.float32, -0.5, 0.5))
        if i < len(filters):
            factors.append(jnp.zeros(
                (channels, filters_full[i + 1], 1), jnp.float32))
    quantiles = jnp.tile(
        jnp.array([-init_scale, 0.0, init_scale], jnp.float32),
        (channels, 1, 1))  # (C, 1, 3)
    return matrices, biases, factors, quantiles


def pack_params(matrices, biases, factors, quantiles):
    C = quantiles.shape[0]
    sw = [jax.nn.softplus(m) for m in matrices]   # parameter setup (glue)
    tf = [jnp.tanh(f) for f in factors]
    parts = [
        sw[0].reshape(C, 3),       # 0..2
        sw[1].reshape(C, 9),       # 3..11
        sw[2].reshape(C, 9),       # 12..20
        sw[3].reshape(C, 9),       # 21..29
        sw[4].reshape(C, 3),       # 30..32
        biases[0].reshape(C, 3),   # 33..35
        biases[1].reshape(C, 3),   # 36..38
        biases[2].reshape(C, 3),   # 39..41
        biases[3].reshape(C, 3),   # 42..44
        biases[4].reshape(C, 1),   # 45
        tf[0].reshape(C, 3),       # 46..48
        tf[1].reshape(C, 3),       # 49..51
        tf[2].reshape(C, 3),       # 52..54
        tf[3].reshape(C, 3),       # 55..57
        quantiles[:, 0, 1:2],      # 58 (median)
    ]
    packed = jnp.concatenate(parts, axis=1).astype(jnp.float32)
    assert packed.shape == (C, NPARAM)
    return packed


# ---------------------------------------------------------------------------
# Pure-JAX reference of EntropyBottleneck.forward (noise_func=None)
# ---------------------------------------------------------------------------
def reference_forward(x, matrices, biases, factors, quantiles):
    N, C, H, W = x.shape
    medians = quantiles[:, :, 1:2].reshape(1, C, 1, 1)
    xq = jnp.round(jnp.clip(x - medians, -128.0, 127.0)) + medians
    v = jnp.transpose(xq, (1, 0, 2, 3)).reshape(C, 1, -1)

    def logits_cum(inp):
        logits = inp
        for i in range(len(matrices)):
            logits = jnp.matmul(jax.nn.softplus(matrices[i]), logits) + biases[i]
            if i < len(factors):
                logits = logits + jnp.tanh(factors[i]) * jnp.tanh(logits)
        return logits

    lower = logits_cum(v - 0.5)
    upper = logits_cum(v + 0.5)
    lik = jax.nn.sigmoid(upper) - jax.nn.sigmoid(lower)
    lik = jnp.maximum(lik, LIKELIHOOD_BOUND)
    lik = lik.reshape(C, N, H, W).transpose(1, 0, 2, 3)
    return xq, lik


if __name__ == "__main__":
    # Small deterministic example: N=2, C=4, H=W=16  (NCHW, like the PyTorch module)
    N, C, H, W = 2, 4, 16, 16
    key = jax.random.PRNGKey(0)
    x = jax.random.normal(key, (N, C, H, W), jnp.float32) * 3.0

    matrices, biases, factors, quantiles = make_params(C, seed=0)
    packed = pack_params(matrices, biases, factors, quantiles)

    xq, lik = entropy_bottleneck_forward(x, packed)
    xq = jax.block_until_ready(xq)
    lik = jax.block_until_ready(lik)

    # correctness check against pure-JAX reference
    xq_ref, lik_ref = reference_forward(x, matrices, biases, factors, quantiles)
    assert xq.shape == (N, C, H, W) and lik.shape == (N, C, H, W)
    np.testing.assert_allclose(np.asarray(xq), np.asarray(xq_ref), rtol=1e-5, atol=1e-5)
    np.testing.assert_allclose(np.asarray(lik), np.asarray(lik_ref), rtol=1e-5, atol=1e-6)

    # TODO(synk): compress/decompress (RANS entropy coder) and update()'s CDF
    # construction are host-side / data-dependent and are not implemented here.
    print("KERNEL_OK")
</pallas_src>

<mosaic_0001>
module attributes {stable_mosaic.version = 11 : i64} {
  func.func @_eb_kernel(%arg0: i32, %arg1: i32, %arg2: i32, %arg3: memref<4x59xf32, #tpu.memory_space<smem>>, %arg4: memref<1x1x8x512xf32, #tpu.memory_space<vmem>>, %arg5: memref<1x1x8x512xf32, #tpu.memory_space<vmem>>, %arg6: memref<1x1x8x512xf32, #tpu.memory_space<vmem>>) attributes {dimension_semantics = [#tpu.dimension_semantics<parallel>, #tpu.dimension_semantics<parallel>, #tpu.dimension_semantics<parallel>], iteration_bounds = array<i64: 2, 4, 1>, scalar_prefetch = 0 : i64, scratch_operands = 0 : i64, tpu.core_type = #tpu.core_type<tc>, window_params = [{transform_indices = @transform_0, window_bounds = array<i64: 4, 59>}, {transform_indices = @transform_1, window_bounds = array<i64: 1, 1, 8, 512>}, {transform_indices = @transform_2, window_bounds = array<i64: 1, 1, 8, 512>}, {transform_indices = @transform_3, window_bounds = array<i64: 1, 1, 8, 512>}]} {
    %0 = arith.index_cast %arg1 : i32 to index
    %c0 = arith.constant 0 : index
    %1 = memref.load %arg3[%0, %c0] : memref<4x59xf32, #tpu.memory_space<smem>>
    %2 = arith.index_cast %arg1 : i32 to index
    %c1 = arith.constant 1 : index
    %3 = memref.load %arg3[%2, %c1] : memref<4x59xf32, #tpu.memory_space<smem>>
    %4 = arith.index_cast %arg1 : i32 to index
    %c2 = arith.constant 2 : index
    %5 = memref.load %arg3[%4, %c2] : memref<4x59xf32, #tpu.memory_space<smem>>
    %6 = arith.index_cast %arg1 : i32 to index
    %c3 = arith.constant 3 : index
    %7 = memref.load %arg3[%6, %c3] : memref<4x59xf32, #tpu.memory_space<smem>>
    %8 = arith.index_cast %arg1 : i32 to index
    %c4 = arith.constant 4 : index
    %9 = memref.load %arg3[%8, %c4] : memref<4x59xf32, #tpu.memory_space<smem>>
    %10 = arith.index_cast %arg1 : i32 to index
    %c5 = arith.constant 5 : index
    %11 = memref.load %arg3[%10, %c5] : memref<4x59xf32, #tpu.memory_space<smem>>
    %12 = arith.index_cast %arg1 : i32 to index
    %c6 = arith.constant 6 : index
    %13 = memref.load %arg3[%12, %c6] : memref<4x59xf32, #tpu.memory_space<smem>>
    %14 = arith.index_cast %arg1 : i32 to index
    %c7 = arith.constant 7 : index
    %15 = memref.load %arg3[%14, %c7] : memref<4x59xf32, #tpu.memory_space<smem>>
    %16 = arith.index_cast %arg1 : i32 to index
    %c8 = arith.constant 8 : index
    %17 = memref.load %arg3[%16, %c8] : memref<4x59xf32, #tpu.memory_space<smem>>
    %18 = arith.index_cast %arg1 : i32 to index
    %c9 = arith.constant 9 : index
    %19 = memref.load %arg3[%18, %c9] : memref<4x59xf32, #tpu.memory_space<smem>>
    %20 = arith.index_cast %arg1 : i32 to index
    %c10 = arith.constant 10 : index
    %21 = memref.load %arg3[%20, %c10] : memref<4x59xf32, #tpu.memory_space<smem>>
    %22 = arith.index_cast %arg1 : i32 to index
    %c11 = arith.constant 11 : index
    %23 = memref.load %arg3[%22, %c11] : memref<4x59xf32, #tpu.memory_space<smem>>
    %24 = arith.index_cast %arg1 : i32 to index
    %c12 = arith.constant 12 : index
    %25 = memref.load %arg3[%24, %c12] : memref<4x59xf32, #tpu.memory_space<smem>>
    %26 = arith.index_cast %arg1 : i32 to index
    %c13 = arith.constant 13 : index
    %27 = memref.load %arg3[%26, %c13] : memref<4x59xf32, #tpu.memory_space<smem>>
    %28 = arith.index_cast %arg1 : i32 to index
    %c14 = arith.constant 14 : index
    %29 = memref.load %arg3[%28, %c14] : memref<4x59xf32, #tpu.memory_space<smem>>
    %30 = arith.index_cast %arg1 : i32 to index
    %c15 = arith.constant 15 : index
    %31 = memref.load %arg3[%30, %c15] : memref<4x59xf32, #tpu.memory_space<smem>>
    %32 = arith.index_cast %arg1 : i32 to index
    %c16 = arith.constant 16 : index
    %33 = memref.load %arg3[%32, %c16] : memref<4x59xf32, #tpu.memory_space<smem>>
    %34 = arith.index_cast %arg1 : i32 to index
    %c17 = arith.constant 17 : index
    %35 = memref.load %arg3[%34, %c17] : memref<4x59xf32, #tpu.memory_space<smem>>
    %36 = arith.index_cast %arg1 : i32 to index
    %c18 = arith.constant 18 : index
    %37 = memref.load %arg3[%36, %c18] : memref<4x59xf32, #tpu.memory_space<smem>>
    %38 = arith.index_cast %arg1 : i32 to index
    %c19 = arith.constant 19 : index
    %39 = memref.load %arg3[%38, %c19] : memref<4x59xf32, #tpu.memory_space<smem>>
    %40 = arith.index_cast %arg1 : i32 to index
    %c20 = arith.constant 20 : index
    %41 = memref.load %arg3[%40, %c20] : memref<4x59xf32, #tpu.memory_space<smem>>
    %42 = arith.index_cast %arg1 : i32 to index
    %c21 = arith.constant 21 : index
    %43 = memref.load %arg3[%42, %c21] : memref<4x59xf32, #tpu.memory_space<smem>>
    %44 = arith.index_cast %arg1 : i32 to index
    %c22 = arith.constant 22 : index
    %45 = memref.load %arg3[%44, %c22] : memref<4x59xf32, #tpu.memory_space<smem>>
    %46 = arith.index_cast %arg1 : i32 to index
    %c23 = arith.constant 23 : index
    %47 = memref.load %arg3[%46, %c23] : memref<4x59xf32, #tpu.memory_space<smem>>
    %48 = arith.index_cast %arg1 : i32 to index
    %c24 = arith.constant 24 : index
    %49 = memref.load %arg3[%48, %c24] : memref<4x59xf32, #tpu.memory_space<smem>>
    %50 = arith.index_cast %arg1 : i32 to index
    %c25 = arith.constant 25 : index
    %51 = memref.load %arg3[%50, %c25] : memref<4x59xf32, #tpu.memory_space<smem>>
    %52 = arith.index_cast %arg1 : i32 to index
    %c26 = arith.constant 26 : index
    %53 = memref.load %arg3[%52, %c26] : memref<4x59xf32, #tpu.memory_space<smem>>
    %54 = arith.index_cast %arg1 : i32 to index
    %c27 = arith.constant 27 : index
    %55 = memref.load %arg3[%54, %c27] : memref<4x59xf32, #tpu.memory_space<smem>>
    %56 = arith.index_cast %arg1 : i32 to index
    %c28 = arith.constant 28 : index
    %57 = memref.load %arg3[%56, %c28] : memref<4x59xf32, #tpu.memory_space<smem>>
    %58 = arith.index_cast %arg1 : i32 to index
    %c29 = arith.constant 29 : index
    %59 = memref.load %arg3[%58, %c29] : memref<4x59xf32, #tpu.memory_space<smem>>
    %60 = arith.index_cast %arg1 : i32 to index
    %c30 = arith.constant 30 : index
    %61 = memref.load %arg3[%60, %c30] : memref<4x59xf32, #tpu.memory_space<smem>>
    %62 = arith.index_cast %arg1 : i32 to index
    %c31 = arith.constant 31 : index
    %63 = memref.load %arg3[%62, %c31] : memref<4x59xf32, #tpu.memory_space<smem>>
    %64 = arith.index_cast %arg1 : i32 to index
    %c32 = arith.constant 32 : index
    %65 = memref.load %arg3[%64, %c32] : memref<4x59xf32, #tpu.memory_space<smem>>
    %66 = arith.index_cast %arg1 : i32 to index
    %c33 = arith.constant 33 : index
    %67 = memref.load %arg3[%66, %c33] : memref<4x59xf32, #tpu.memory_space<smem>>
    %68 = arith.index_cast %arg1 : i32 to index
    %c34 = arith.constant 34 : index
    %69 = memref.load %arg3[%68, %c34] : memref<4x59xf32, #tpu.memory_space<smem>>
    %70 = arith.index_cast %arg1 : i32 to index
    %c35 = arith.constant 35 : index
    %71 = memref.load %arg3[%70, %c35] : memref<4x59xf32, #tpu.memory_space<smem>>
    %72 = arith.index_cast %arg1 : i32 to index
    %c36 = arith.constant 36 : index
    %73 = memref.load %arg3[%72, %c36] : memref<4x59xf32, #tpu.memory_space<smem>>
    %74 = arith.index_cast %arg1 : i32 to index
    %c37 = arith.constant 37 : index
    %75 = memref.load %arg3[%74, %c37] : memref<4x59xf32, #tpu.memory_space<smem>>
    %76 = arith.index_cast %arg1 : i32 to index
    %c38 = arith.constant 38 : index
    %77 = memref.load %arg3[%76, %c38] : memref<4x59xf32, #tpu.memory_space<smem>>
    %78 = arith.index_cast %arg1 : i32 to index
    %c39 = arith.constant 39 : index
    %79 = memref.load %arg3[%78, %c39] : memref<4x59xf32, #tpu.memory_space<smem>>
    %80 = arith.index_cast %arg1 : i32 to index
    %c40 = arith.constant 40 : index
    %81 = memref.load %arg3[%80, %c40] : memref<4x59xf32, #tpu.memory_space<smem>>
    %82 = arith.index_cast %arg1 : i32 to index
    %c41 = arith.constant 41 : index
    %83 = memref.load %arg3[%82, %c41] : memref<4x59xf32, #tpu.memory_space<smem>>
    %84 = arith.index_cast %arg1 : i32 to index
    %c42 = arith.constant 42 : index
    %85 = memref.load %arg3[%84, %c42] : memref<4x59xf32, #tpu.memory_space<smem>>
    %86 = arith.index_cast %arg1 : i32 to index
    %c43 = arith.constant 43 : index
    %87 = memref.load %arg3[%86, %c43] : memref<4x59xf32, #tpu.memory_space<smem>>
    %88 = arith.index_cast %arg1 : i32 to index
    %c44 = arith.constant 44 : index
    %89 = memref.load %arg3[%88, %c44] : memref<4x59xf32, #tpu.memory_space<smem>>
    %90 = arith.index_cast %arg1 : i32 to index
    %c45 = arith.constant 45 : index
    %91 = memref.load %arg3[%90, %c45] : memref<4x59xf32, #tpu.memory_space<smem>>
    %92 = arith.index_cast %arg1 : i32 to index
    %c46 = arith.constant 46 : index
    %93 = memref.load %arg3[%92, %c46] : memref<4x59xf32, #tpu.memory_space<smem>>
    %94 = arith.index_cast %arg1 : i32 to index
    %c47 = arith.constant 47 : index
    %95 = memref.load %arg3[%94, %c47] : memref<4x59xf32, #tpu.memory_space<smem>>
    %96 = arith.index_cast %arg1 : i32 to index
    %c48 = arith.constant 48 : index
    %97 = memref.load %arg3[%96, %c48] : memref<4x59xf32, #tpu.memory_space<smem>>
    %98 = arith.index_cast %arg1 : i32 to index
    %c49 = arith.constant 49 : index
    %99 = memref.load %arg3[%98, %c49] : memref<4x59xf32, #tpu.memory_space<smem>>
    %100 = arith.index_cast %arg1 : i32 to index
    %c50 = arith.constant 50 : index
    %101 = memref.load %arg3[%100, %c50] : memref<4x59xf32, #tpu.memory_space<smem>>
    %102 = arith.index_cast %arg1 : i32 to index
    %c51 = arith.constant 51 : index
    %103 = memref.load %arg3[%102, %c51] : memref<4x59xf32, #tpu.memory_space<smem>>
    %104 = arith.index_cast %arg1 : i32 to index
    %c52 = arith.constant 52 : index
    %105 = memref.load %arg3[%104, %c52] : memref<4x59xf32, #tpu.memory_space<smem>>
    %106 = arith.index_cast %arg1 : i32 to index
    %c53 = arith.constant 53 : index
    %107 = memref.load %arg3[%106, %c53] : memref<4x59xf32, #tpu.memory_space<smem>>
    %108 = arith.index_cast %arg1 : i32 to index
    %c54 = arith.constant 54 : index
    %109 = memref.load %arg3[%108, %c54] : memref<4x59xf32, #tpu.memory_space<smem>>
    %110 = arith.index_cast %arg1 : i32 to index
    %c55 = arith.constant 55 : index
    %111 = memref.load %arg3[%110, %c55] : memref<4x59xf32, #tpu.memory_space<smem>>
    %112 = arith.index_cast %arg1 : i32 to index
    %c56 = arith.constant 56 : index
    %113 = memref.load %arg3[%112, %c56] : memref<4x59xf32, #tpu.memory_space<smem>>
    %114 = arith.index_cast %arg1 : i32 to index
    %c57 = arith.constant 57 : index
    %115 = memref.load %arg3[%114, %c57] : memref<4x59xf32, #tpu.memory_space<smem>>
    %116 = arith.index_cast %arg1 : i32 to index
    %c58 = arith.constant 58 : index
    %117 = memref.load %arg3[%116, %c58] : memref<4x59xf32, #tpu.memory_space<smem>>
    %c0_0 = arith.constant 0 : index
    %c0_1 = arith.constant 0 : index
    %c0_2 = arith.constant 0 : index
    %c0_3 = arith.constant 0 : index
    %118 = vector.load %arg4[%c0_0, %c0_1, %c0_2, %c0_3] : memref<1x1x8x512xf32, #tpu.memory_space<vmem>>, vector<1x1x8x512xf32>
    %119 = vector.shape_cast %118 : vector<1x1x8x512xf32> to vector<8x512xf32>
    %120 = vector.broadcast %117 : f32 to vector<8x512xf32>
    %121 = arith.subf %119, %120 : vector<8x512xf32>
    %cst = arith.constant -1.280000e+02 : f32
    %cst_4 = arith.constant 1.270000e+02 : f32
    %122 = vector.broadcast %cst : f32 to vector<8x512xf32>
    %123 = arith.maximumf %122, %121 : vector<8x512xf32>
    %124 = vector.broadcast %cst_4 : f32 to vector<8x512xf32>
    %125 = arith.minimumf %124, %123 : vector<8x512xf32>
    %126 = math.roundeven %125 : vector<8x512xf32>
    %127 = vector.broadcast %117 : f32 to vector<8x512xf32>
    %128 = arith.addf %126, %127 : vector<8x512xf32>
    %c0_5 = arith.constant 0 : index
    %c0_6 = arith.constant 0 : index
    %c0_7 = arith.constant 0 : index
    %c0_8 = arith.constant 0 : index
    %129 = vector.load %arg5[%c0_5, %c0_6, %c0_7, %c0_8] : memref<1x1x8x512xf32, #tpu.memory_space<vmem>>, vector<1x1x8x512xf32>
    %130 = vector.shape_cast %129 : vector<1x1x8x512xf32> to vector<8x512xf32>
    %131 = vector.shape_cast %128 : vector<8x512xf32> to vector<1x1x8x512xf32>
    tpu.vector_store %arg5[%c0_5, %c0_6, %c0_7, %c0_8], %131 {strides = array<i32>} : memref<1x1x8x512xf32, #tpu.memory_space<vmem>>, vector<1x1x8x512xf32>,
    %cst_9 = arith.constant 5.000000e-01 : f32
    %132 = vector.broadcast %cst_9 : f32 to vector<8x512xf32>
    %133 = arith.subf %128, %132 : vector<8x512xf32>
    %134 = vector.broadcast %1 : f32 to vector<8x512xf32>
    %135 = arith.mulf %134, %133 : vector<8x512xf32>
    %136 = vector.broadcast %67 : f32 to vector<8x512xf32>
    %137 = arith.addf %135, %136 : vector<8x512xf32>
    %138 = math.tanh %137 : vector<8x512xf32>
    %139 = vector.broadcast %93 : f32 to vector<8x512xf32>
    %140 = arith.mulf %139, %138 : vector<8x512xf32>
    %141 = arith.addf %137, %140 : vector<8x512xf32>
    %142 = vector.broadcast %3 : f32 to vector<8x512xf32>
    %143 = arith.mulf %142, %133 : vector<8x512xf32>
    %144 = vector.broadcast %69 : f32 to vector<8x512xf32>
    %145 = arith.addf %143, %144 : vector<8x512xf32>
    %146 = math.tanh %145 : vector<8x512xf32>
    %147 = vector.broadcast %95 : f32 to vector<8x512xf32>
    %148 = arith.mulf %147, %146 : vector<8x512xf32>
    %149 = arith.addf %145, %148 : vector<8x512xf32>
    %150 = vector.broadcast %5 : f32 to vector<8x512xf32>
    %151 = arith.mulf %150, %133 : vector<8x512xf32>
    %152 = vector.broadcast %71 : f32 to vector<8x512xf32>
    %153 = arith.addf %151, %152 : vector<8x512xf32>
    %154 = math.tanh %153 : vector<8x512xf32>
    %155 = vector.broadcast %97 : f32 to vector<8x512xf32>
    %156 = arith.mulf %155, %154 : vector<8x512xf32>
    %157 = arith.addf %153, %156 : vector<8x512xf32>
    %158 = vector.broadcast %7 : f32 to vector<8x512xf32>
    %159 = arith.mulf %158, %141 : vector<8x512xf32>
    %160 = vector.broadcast %9 : f32 to vector<8x512xf32>
    %161 = arith.mulf %160, %149 : vector<8x512xf32>
    %162 = arith.addf %159, %161 : vector<8x512xf32>
    %163 = vector.broadcast %11 : f32 to vector<8x512xf32>
    %164 = arith.mulf %163, %157 : vector<8x512xf32>
    %165 = arith.addf %162, %164 : vector<8x512xf32>
    %166 = vector.broadcast %73 : f32 to vector<8x512xf32>
    %167 = arith.addf %165, %166 : vector<8x512xf32>
    %168 = math.tanh %167 : vector<8x512xf32>
    %169 = vector.broadcast %99 : f32 to vector<8x512xf32>
    %170 = arith.mulf %169, %168 : vector<8x512xf32>
    %171 = arith.addf %167, %170 : vector<8x512xf32>
    %172 = vector.broadcast %13 : f32 to vector<8x512xf32>
    %173 = arith.mulf %172, %141 : vector<8x512xf32>
    %174 = vector.broadcast %15 : f32 to vector<8x512xf32>
    %175 = arith.mulf %174, %149 : vector<8x512xf32>
    %176 = arith.addf %173, %175 : vector<8x512xf32>
    %177 = vector.broadcast %17 : f32 to vector<8x512xf32>
    %178 = arith.mulf %177, %157 : vector<8x512xf32>
    %179 = arith.addf %176, %178 : vector<8x512xf32>
    %180 = vector.broadcast %75 : f32 to vector<8x512xf32>
    %181 = arith.addf %179, %180 : vector<8x512xf32>
    %182 = math.tanh %181 : vector<8x512xf32>
    %183 = vector.broadcast %101 : f32 to vector<8x512xf32>
    %184 = arith.mulf %183, %182 : vector<8x512xf32>
    %185 = arith.addf %181, %184 : vector<8x512xf32>
    %186 = vector.broadcast %19 : f32 to vector<8x512xf32>
    %187 = arith.mulf %186, %141 : vector<8x512xf32>
    %188 = vector.broadcast %21 : f32 to vector<8x512xf32>
    %189 = arith.mulf %188, %149 : vector<8x512xf32>
    %190 = arith.addf %187, %189 : vector<8x512xf32>
    %191 = vector.broadcast %23 : f32 to vector<8x512xf32>
    %192 = arith.mulf %191, %157 : vector<8x512xf32>
    %193 = arith.addf %190, %192 : vector<8x512xf32>
    %194 = vector.broadcast %77 : f32 to vector<8x512xf32>
    %195 = arith.addf %193, %194 : vector<8x512xf32>
    %196 = math.tanh %195 : vector<8x512xf32>
    %197 = vector.broadcast %103 : f32 to vector<8x512xf32>
    %198 = arith.mulf %197, %196 : vector<8x512xf32>
    %199 = arith.addf %195, %198 : vector<8x512xf32>
    %200 = vector.broadcast %25 : f32 to vector<8x512xf32>
    %201 = arith.mulf %200, %171 : vector<8x512xf32>
    %202 = vector.broadcast %27 : f32 to vector<8x512xf32>
    %203 = arith.mulf %202, %185 : vector<8x512xf32>
    %204 = arith.addf %201, %203 : vector<8x512xf32>
    %205 = vector.broadcast %29 : f32 to vector<8x512xf32>
    %206 = arith.mulf %205, %199 : vector<8x512xf32>
    %207 = arith.addf %204, %206 : vector<8x512xf32>
    %208 = vector.broadcast %79 : f32 to vector<8x512xf32>
    %209 = arith.addf %207, %208 : vector<8x512xf32>
    %210 = math.tanh %209 : vector<8x512xf32>
    %211 = vector.broadcast %105 : f32 to vector<8x512xf32>
    %212 = arith.mulf %211, %210 : vector<8x512xf32>
    %213 = arith.addf %209, %212 : vector<8x512xf32>
    %214 = vector.broadcast %31 : f32 to vector<8x512xf32>
    %215 = arith.mulf %214, %171 : vector<8x512xf32>
    %216 = vector.broadcast %33 : f32 to vector<8x512xf32>
    %217 = arith.mulf %216, %185 : vector<8x512xf32>
    %218 = arith.addf %215, %217 : vector<8x512xf32>
    %219 = vector.broadcast %35 : f32 to vector<8x512xf32>
    %220 = arith.mulf %219, %199 : vector<8x512xf32>
    %221 = arith.addf %218, %220 : vector<8x512xf32>
    %222 = vector.broadcast %81 : f32 to vector<8x512xf32>
    %223 = arith.addf %221, %222 : vector<8x512xf32>
    %224 = math.tanh %223 : vector<8x512xf32>
    %225 = vector.broadcast %107 : f32 to vector<8x512xf32>
    %226 = arith.mulf %225, %224 : vector<8x512xf32>
    %227 = arith.addf %223, %226 : vector<8x512xf32>
    %228 = vector.broadcast %37 : f32 to vector<8x512xf32>
    %229 = arith.mulf %228, %171 : vector<8x512xf32>
    %230 = vector.broadcast %39 : f32 to vector<8x512xf32>
    %231 = arith.mulf %230, %185 : vector<8x512xf32>
    %232 = arith.addf %229, %231 : vector<8x512xf32>
    %233 = vector.broadcast %41 : f32 to vector<8x512xf32>
    %234 = arith.mulf %233, %199 : vector<8x512xf32>
    %235 = arith.addf %232, %234 : vector<8x512xf32>
    %236 = vector.broadcast %83 : f32 to vector<8x512xf32>
    %237 = arith.addf %235, %236 : vector<8x512xf32>
    %238 = math.tanh %237 : vector<8x512xf32>
    %239 = vector.broadcast %109 : f32 to vector<8x512xf32>
    %240 = arith.mulf %239, %238 : vector<8x512xf32>
    %241 = arith.addf %237, %240 : vector<8x512xf32>
    %242 = vector.broadcast %43 : f32 to vector<8x512xf32>
    %243 = arith.mulf %242, %213 : vector<8x512xf32>
    %244 = vector.broadcast %45 : f32 to vector<8x512xf32>
    %245 = arith.mulf %244, %227 : vector<8x512xf32>
    %246 = arith.addf %243, %245 : vector<8x512xf32>
    %247 = vector.broadcast %47 : f32 to vector<8x512xf32>
    %248 = arith.mulf %247, %241 : vector<8x512xf32>
    %249 = arith.addf %246, %248 : vector<8x512xf32>
    %250 = vector.broadcast %85 : f32 to vector<8x512xf32>
    %251 = arith.addf %249, %250 : vector<8x512xf32>
    %252 = math.tanh %251 : vector<8x512xf32>
    %253 = vector.broadcast %111 : f32 to vector<8x512xf32>
    %254 = arith.mulf %253, %252 : vector<8x512xf32>
    %255 = arith.addf %251, %254 : vector<8x512xf32>
    %256 = vector.broadcast %49 : f32 to vector<8x512xf32>
    %257 = arith.mulf %256, %213 : vector<8x512xf32>
    %258 = vector.broadcast %51 : f32 to vector<8x512xf32>
    %259 = arith.mulf %258, %227 : vector<8x512xf32>
    %260 = arith.addf %257, %259 : vector<8x512xf32>
    %261 = vector.broadcast %53 : f32 to vector<8x512xf32>
    %262 = arith.mulf %261, %241 : vector<8x512xf32>
    %263 = arith.addf %260, %262 : vector<8x512xf32>
    %264 = vector.broadcast %87 : f32 to vector<8x512xf32>
    %265 = arith.addf %263, %264 : vector<8x512xf32>
    %266 = math.tanh %265 : vector<8x512xf32>
    %267 = vector.broadcast %113 : f32 to vector<8x512xf32>
    %268 = arith.mulf %267, %266 : vector<8x512xf32>
    %269 = arith.addf %265, %268 : vector<8x512xf32>
    %270 = vector.broadcast %55 : f32 to vector<8x512xf32>
    %271 = arith.mulf %270, %213 : vector<8x512xf32>
    %272 = vector.broadcast %57 : f32 to vector<8x512xf32>
    %273 = arith.mulf %272, %227 : vector<8x512xf32>
    %274 = arith.addf %271, %273 : vector<8x512xf32>
    %275 = vector.broadcast %59 : f32 to vector<8x512xf32>
    %276 = arith.mulf %275, %241 : vector<8x512xf32>
    %277 = arith.addf %274, %276 : vector<8x512xf32>
    %278 = vector.broadcast %89 : f32 to vector<8x512xf32>
    %279 = arith.addf %277, %278 : vector<8x512xf32>
    %280 = math.tanh %279 : vector<8x512xf32>
    %281 = vector.broadcast %115 : f32 to vector<8x512xf32>
    %282 = arith.mulf %281, %280 : vector<8x512xf32>
    %283 = arith.addf %279, %282 : vector<8x512xf32>
    %284 = vector.broadcast %61 : f32 to vector<8x512xf32>
    %285 = arith.mulf %284, %255 : vector<8x512xf32>
    %286 = vector.broadcast %63 : f32 to vector<8x512xf32>
    %287 = arith.mulf %286, %269 : vector<8x512xf32>
    %288 = arith.addf %285, %287 : vector<8x512xf32>
    %289 = vector.broadcast %65 : f32 to vector<8x512xf32>
    %290 = arith.mulf %289, %283 : vector<8x512xf32>
    %291 = arith.addf %288, %290 : vector<8x512xf32>
    %292 = vector.broadcast %91 : f32 to vector<8x512xf32>
    %293 = arith.addf %291, %292 : vector<8x512xf32>
    %cst_10 = arith.constant 5.000000e-01 : f32
    %294 = vector.broadcast %cst_10 : f32 to vector<8x512xf32>
    %295 = arith.addf %128, %294 : vector<8x512xf32>
    %296 = vector.broadcast %1 : f32 to vector<8x512xf32>
    %297 = arith.mulf %296, %295 : vector<8x512xf32>
    %298 = vector.broadcast %67 : f32 to vector<8x512xf32>
    %299 = arith.addf %297, %298 : vector<8x512xf32>
    %300 = math.tanh %299 : vector<8x512xf32>
    %301 = vector.broadcast %93 : f32 to vector<8x512xf32>
    %302 = arith.mulf %301, %300 : vector<8x512xf32>
    %303 = arith.addf %299, %302 : vector<8x512xf32>
    %304 = vector.broadcast %3 : f32 to vector<8x512xf32>
    %305 = arith.mulf %304, %295 : vector<8x512xf32>
    %306 = vector.broadcast %69 : f32 to vector<8x512xf32>
    %307 = arith.addf %305, %306 : vector<8x512xf32>
    %308 = math.tanh %307 : vector<8x512xf32>
    %309 = vector.broadcast %95 : f32 to vector<8x512xf32>
    %310 = arith.mulf %309, %308 : vector<8x512xf32>
    %311 = arith.addf %307, %310 : vector<8x512xf32>
    %312 = vector.broadcast %5 : f32 to vector<8x512xf32>
    %313 = arith.mulf %312, %295 : vector<8x512xf32>
    %314 = vector.broadcast %71 : f32 to vector<8x512xf32>
    %315 = arith.addf %313, %314 : vector<8x512xf32>
    %316 = math.tanh %315 : vector<8x512xf32>
    %317 = vector.broadcast %97 : f32 to vector<8x512xf32>
    %318 = arith.mulf %317, %316 : vector<8x512xf32>
    %319 = arith.addf %315, %318 : vector<8x512xf32>
    %320 = vector.broadcast %7 : f32 to vector<8x512xf32>
    %321 = arith.mulf %320, %303 : vector<8x512xf32>
    %322 = vector.broadcast %9 : f32 to vector<8x512xf32>
    %323 = arith.mulf %322, %311 : vector<8x512xf32>
    %324 = arith.addf %321, %323 : vector<8x512xf32>
    %325 = vector.broadcast %11 : f32 to vector<8x512xf32>
    %326 = arith.mulf %325, %319 : vector<8x512xf32>
    %327 = arith.addf %324, %326 : vector<8x512xf32>
    %328 = vector.broadcast %73 : f32 to vector<8x512xf32>
    %329 = arith.addf %327, %328 : vector<8x512xf32>
    %330 = math.tanh %329 : vector<8x512xf32>
    %331 = vector.broadcast %99 : f32 to vector<8x512xf32>
    %332 = arith.mulf %331, %330 : vector<8x512xf32>
    %333 = arith.addf %329, %332 : vector<8x512xf32>
    %334 = vector.broadcast %13 : f32 to vector<8x512xf32>
    %335 = arith.mulf %334, %303 : vector<8x512xf32>
    %336 = vector.broadcast %15 : f32 to vector<8x512xf32>
    %337 = arith.mulf %336, %311 : vector<8x512xf32>
    %338 = arith.addf %335, %337 : vector<8x512xf32>
    %339 = vector.broadcast %17 : f32 to vector<8x512xf32>
    %340 = arith.mulf %339, %319 : vector<8x512xf32>
    %341 = arith.addf %338, %340 : vector<8x512xf32>
    %342 = vector.broadcast %75 : f32 to vector<8x512xf32>
    %343 = arith.addf %341, %342 : vector<8x512xf32>
    %344 = math.tanh %343 : vector<8x512xf32>
    %345 = vector.broadcast %101 : f32 to vector<8x512xf32>
    %346 = arith.mulf %345, %344 : vector<8x512xf32>
    %347 = arith.addf %343, %346 : vector<8x512xf32>
    %348 = vector.broadcast %19 : f32 to vector<8x512xf32>
    %349 = arith.mulf %348, %303 : vector<8x512xf32>
    %350 = vector.broadcast %21 : f32 to vector<8x512xf32>
    %351 = arith.mulf %350, %311 : vector<8x512xf32>
    %352 = arith.addf %349, %351 : vector<8x512xf32>
    %353 = vector.broadcast %23 : f32 to vector<8x512xf32>
    %354 = arith.mulf %353, %319 : vector<8x512xf32>
    %355 = arith.addf %352, %354 : vector<8x512xf32>
    %356 = vector.broadcast %77 : f32 to vector<8x512xf32>
    %357 = arith.addf %355, %356 : vector<8x512xf32>
    %358 = math.tanh %357 : vector<8x512xf32>
    %359 = vector.broadcast %103 : f32 to vector<8x512xf32>
    %360 = arith.mulf %359, %358 : vector<8x512xf32>
    %361 = arith.addf %357, %360 : vector<8x512xf32>
    %362 = vector.broadcast %25 : f32 to vector<8x512xf32>
    %363 = arith.mulf %362, %333 : vector<8x512xf32>
    %364 = vector.broadcast %27 : f32 to vector<8x512xf32>
    %365 = arith.mulf %364, %347 : vector<8x512xf32>
    %366 = arith.addf %363, %365 : vector<8x512xf32>
    %367 = vector.broadcast %29 : f32 to vector<8x512xf32>
    %368 = arith.mulf %367, %361 : vector<8x512xf32>
    %369 = arith.addf %366, %368 : vector<8x512xf32>
    %370 = vector.broadcast %79 : f32 to vector<8x512xf32>
    %371 = arith.addf %369, %370 : vector<8x512xf32>
    %372 = math.tanh %371 : vector<8x512xf32>
    %373 = vector.broadcast %105 : f32 to vector<8x512xf32>
    %374 = arith.mulf %373, %372 : vector<8x512xf32>
    %375 = arith.addf %371, %374 : vector<8x512xf32>
    %376 = vector.broadcast %31 : f32 to vector<8x512xf32>
    %377 = arith.mulf %376, %333 : vector<8x512xf32>
    %378 = vector.broadcast %33 : f32 to vector<8x512xf32>
    %379 = arith.mulf %378, %347 : vector<8x512xf32>
    %380 = arith.addf %377, %379 : vector<8x512xf32>
    %381 = vector.broadcast %35 : f32 to vector<8x512xf32>
    %382 = arith.mulf %381, %361 : vector<8x512xf32>
    %383 = arith.addf %380, %382 : vector<8x512xf32>
    %384 = vector.broadcast %81 : f32 to vector<8x512xf32>
    %385 = arith.addf %383, %384 : vector<8x512xf32>
    %386 = math.tanh %385 : vector<8x512xf32>
    %387 = vector.broadcast %107 : f32 to vector<8x512xf32>
    %388 = arith.mulf %387, %386 : vector<8x512xf32>
    %389 = arith.addf %385, %388 : vector<8x512xf32>
    %390 = vector.broadcast %37 : f32 to vector<8x512xf32>
    %391 = arith.mulf %390, %333 : vector<8x512xf32>
    %392 = vector.broadcast %39 : f32 to vector<8x512xf32>
    %393 = arith.mulf %392, %347 : vector<8x512xf32>
    %394 = arith.addf %391, %393 : vector<8x512xf32>
    %395 = vector.broadcast %41 : f32 to vector<8x512xf32>
    %396 = arith.mulf %395, %361 : vector<8x512xf32>
    %397 = arith.addf %394, %396 : vector<8x512xf32>
    %398 = vector.broadcast %83 : f32 to vector<8x512xf32>
    %399 = arith.addf %397, %398 : vector<8x512xf32>
    %400 = math.tanh %399 : vector<8x512xf32>
    %401 = vector.broadcast %109 : f32 to vector<8x512xf32>
    %402 = arith.mulf %401, %400 : vector<8x512xf32>
    %403 = arith.addf %399, %402 : vector<8x512xf32>
    %404 = vector.broadcast %43 : f32 to vector<8x512xf32>
    %405 = arith.mulf %404, %375 : vector<8x512xf32>
    %406 = vector.broadcast %45 : f32 to vector<8x512xf32>
    %407 = arith.mulf %406, %389 : vector<8x512xf32>
    %408 = arith.addf %405, %407 : vector<8x512xf32>
    %409 = vector.broadcast %47 : f32 to vector<8x512xf32>
    %410 = arith.mulf %409, %403 : vector<8x512xf32>
    %411 = arith.addf %408, %410 : vector<8x512xf32>
    %412 = vector.broadcast %85 : f32 to vector<8x512xf32>
    %413 = arith.addf %411, %412 : vector<8x512xf32>
    %414 = math.tanh %413 : vector<8x512xf32>
    %415 = vector.broadcast %111 : f32 to vector<8x512xf32>
    %416 = arith.mulf %415, %414 : vector<8x512xf32>
    %417 = arith.addf %413, %416 : vector<8x512xf32>
    %418 = vector.broadcast %49 : f32 to vector<8x512xf32>
    %419 = arith.mulf %418, %375 : vector<8x512xf32>
    %420 = vector.broadcast %51 : f32 to vector<8x512xf32>
    %421 = arith.mulf %420, %389 : vector<8x512xf32>
    %422 = arith.addf %419, %421 : vector<8x512xf32>
    %423 = vector.broadcast %53 : f32 to vector<8x512xf32>
    %424 = arith.mulf %423, %403 : vector<8x512xf32>
    %425 = arith.addf %422, %424 : vector<8x512xf32>
    %426 = vector.broadcast %87 : f32 to vector<8x512xf32>
    %427 = arith.addf %425, %426 : vector<8x512xf32>
    %428 = math.tanh %427 : vector<8x512xf32>
    %429 = vector.broadcast %113 : f32 to vector<8x512xf32>
    %430 = arith.mulf %429, %428 : vector<8x512xf32>
    %431 = arith.addf %427, %430 : vector<8x512xf32>
    %432 = vector.broadcast %55 : f32 to vector<8x512xf32>
    %433 = arith.mulf %432, %375 : vector<8x512xf32>
    %434 = vector.broadcast %57 : f32 to vector<8x512xf32>
    %435 = arith.mulf %434, %389 : vector<8x512xf32>
    %436 = arith.addf %433, %435 : vector<8x512xf32>
    %437 = vector.broadcast %59 : f32 to vector<8x512xf32>
    %438 = arith.mulf %437, %403 : vector<8x512xf32>
    %439 = arith.addf %436, %438 : vector<8x512xf32>
    %440 = vector.broadcast %89 : f32 to vector<8x512xf32>
    %441 = arith.addf %439, %440 : vector<8x512xf32>
    %442 = math.tanh %441 : vector<8x512xf32>
    %443 = vector.broadcast %115 : f32 to vector<8x512xf32>
    %444 = arith.mulf %443, %442 : vector<8x512xf32>
    %445 = arith.addf %441, %444 : vector<8x512xf32>
    %446 = vector.broadcast %61 : f32 to vector<8x512xf32>
    %447 = arith.mulf %446, %417 : vector<8x512xf32>
    %448 = vector.broadcast %63 : f32 to vector<8x512xf32>
    %449 = arith.mulf %448, %431 : vector<8x512xf32>
    %450 = arith.addf %447, %449 : vector<8x512xf32>
    %451 = vector.broadcast %65 : f32 to vector<8x512xf32>
    %452 = arith.mulf %451, %445 : vector<8x512xf32>
    %453 = arith.addf %450, %452 : vector<8x512xf32>
    %454 = vector.broadcast %91 : f32 to vector<8x512xf32>
    %455 = arith.addf %453, %454 : vector<8x512xf32>
    %456 = arith.negf %455 : vector<8x512xf32>
    %457 = math.exp %456 : vector<8x512xf32>
    %cst_11 = arith.constant 1.000000e+00 : f32
    %458 = vector.broadcast %cst_11 : f32 to vector<8x512xf32>
    %459 = arith.addf %458, %457 : vector<8x512xf32>
    %460 = arith.divf %458, %459 : vector<8x512xf32>
    %461 = arith.negf %293 : vector<8x512xf32>
    %462 = math.exp %461 : vector<8x512xf32>
    %cst_12 = arith.constant 1.000000e+00 : f32
    %463 = vector.broadcast %cst_12 : f32 to vector<8x512xf32>
    %464 = arith.addf %463, %462 : vector<8x512xf32>
    %465 = arith.divf %463, %464 : vector<8x512xf32>
    %466 = arith.subf %460, %465 : vector<8x512xf32>
    %cst_13 = arith.constant 9.99999971E-10 : f32
    %467 = vector.broadcast %cst_13 : f32 to vector<8x512xf32>
    %468 = arith.maximumf %466, %467 : vector<8x512xf32>
    %c0_14 = arith.constant 0 : index
    %c0_15 = arith.constant 0 : index
    %c0_16 = arith.constant 0 : index
    %c0_17 = arith.constant 0 : index
    %469 = vector.load %arg6[%c0_14, %c0_15, %c0_16, %c0_17] : memref<1x1x8x512xf32, #tpu.memory_space<vmem>>, vector<1x1x8x512xf32>
    %470 = vector.shape_cast %469 : vector<1x1x8x512xf32> to vector<8x512xf32>
    %471 = vector.shape_cast %468 : vector<8x512xf32> to vector<1x1x8x512xf32>
    tpu.vector_store %arg6[%c0_14, %c0_15, %c0_16, %c0_17], %471 {strides = array<i32>} : memref<1x1x8x512xf32, #tpu.memory_space<vmem>>, vector<1x1x8x512xf32>,
    return
  }
  func.func @transform_0(%arg0: i32, %arg1: i32, %arg2: i32) -> (i32, i32) {
    %c0_i32 = arith.constant 0 : i32
    %c0_i32_0 = arith.constant 0 : i32
    %c0_i32_1 = arith.constant 0 : i32
    return %c0_i32, %c0_i32_0 : i32, i32
  }
  func.func @transform_1(%arg0: i32, %arg1: i32, %arg2: i32) -> (i32, i32, i32, i32) {
    %c0_i32 = arith.constant 0 : i32
    %c0_i32_0 = arith.constant 0 : i32
    return %arg0, %arg1, %arg2, %c0_i32 : i32, i32, i32, i32
  }
  func.func @transform_2(%arg0: i32, %arg1: i32, %arg2: i32) -> (i32, i32, i32, i32) {
    %c0_i32 = arith.constant 0 : i32
    %c0_i32_0 = arith.constant 0 : i32
    return %arg0, %arg1, %arg2, %c0_i32 : i32, i32, i32, i32
  }
  func.func @transform_3(%arg0: i32, %arg1: i32, %arg2: i32) -> (i32, i32, i32, i32) {
    %c0_i32 = arith.constant 0 : i32
    %c0_i32_0 = arith.constant 0 : i32
    return %arg0, %arg1, %arg2, %c0_i32 : i32, i32, i32, i32
  }
}

</mosaic_0001>

<llo_original>
// kernel: tpu_custom_call.1
$region0: #{tpu_custom_call.1}
  #allocation0 [shape = 'u32[]', space=smem, size = 0x4, offset = 0x4, fixed_abs, tag = 'smem constant byte address 0x4 - core index']
  #allocation1 [shape = 'u32[72,128]{1,0:T(1,128)}', space=vmem, size = 0x9000, scoped, tag = 'internal scratch']
  %s0 = inlined_call_operand.hbm [shape: f32[4,59], index: 0, kind: input, shape index: {}]
  %s1 = inlined_call_operand.hbm [shape: f32[2,4,8,512], index: 1, kind: input, shape index: {}]
  %s2 = inlined_call_operand.hbm [shape: f32[2,4,8,512], index: 2, kind: output, shape index: {0}]
  %s3 = inlined_call_operand.hbm [shape: f32[2,4,8,512], index: 3, kind: output, shape index: {1}]
  %4 = xla_tuple %s2, %s3
  %s5 = sld [smem:[#allocation0]]
  $region57: #{tpu_custom_call.1} parent=0
    _
  %s7 = ssub.s32 1, %s5
  %s8 = scalar_select 0, %s7, %s5
  $region1: #{tpu_custom_call.1} parent=0
    #allocation2 [shape = 'u8[2048]{0}', space=smem, size = 0x800, scoped, tag = 'input window, operand 0, single buffered']
    #allocation3 [shape = 's32[2]{0}', space=sflag, size = 0x8, scoped, tag = 'scoped memory for tpu_custom_call.1']
    #allocation4 [shape = 's32[2]{0}', space=sflag, size = 0x8, scoped, tag = 'scoped memory for tpu_custom_call.1']
    #allocation5 [shape = 's32[2]{0}', space=sflag, size = 0x8, scoped, tag = 'scoped memory for tpu_custom_call.1']
    #allocation6 [shape = 'u8[32768]{0}', space=vmem, size = 0x8000, scoped, tag = 'input window, operand 1']
    #allocation7 [shape = 'u8[32768]{0}', space=vmem, size = 0x8000, scoped, tag = 'output window, operand 0']
    #allocation8 [shape = 'u8[32768]{0}', space=vmem, size = 0x8000, scoped, tag = 'output window, operand 1']
    #allocation9 [shape = 's32[2]{0}', space=sflag, size = 0x8, scoped, tag = 'scoped memory for tpu_custom_call.1']
    %9 = vsyncpa [#allocation5], 0
    %10 = vsyncpa [#allocation3], 0
    %s11 = scalar_lea.sflag [#allocation3], 1
    %12 = vsyncpa %s11, 0
    %13 = vsyncpa [#allocation4], 0
    %s14 = scalar_lea.sflag [#allocation4], 1
    %15 = vsyncpa %s14, 0
    %16 = vsyncpa [#allocation9], 0
    %s17 = scalar_lea.sflag [#allocation9], 1
    %18 = vsyncpa %s17, 0
    loop: start=0, step=1, limit=10
    $region2: #{tpu_custom_call.1} parent=1 // loop_pre_header
      _
    $region3: #{tpu_custom_call.1} parent=1 // loop_header
      %s20 = sphi 0, %s24
      %p21 = scmp.ge.s32.totalorder %s20, 10
      %s27 = sphi 0, %s46
      %s28 = sphi 0, %s42
      %s29 = sphi 0, %s38
      %s30 = sphi 0, %s27
      %s31 = sphi 0, %s28
      %s32 = sphi 0, %s29
      %s33 = sphi 0, %s30
      %s34 = sphi 0, %s31
      %s35 = sphi 0, %s32
      %s47 = sphi 0, %s47
      %s49 = sphi 0, %s47
      %s50 = sphi 0, %s49
      %s64 = sphi 0, %s50
      %s74 = sphi 0, %s76
      %s77 = sphi 0, %s74
      %s78 = sphi 0, %s77
      %s94 = sphi 0, %s78
      %s104 = sphi 0, %s106
      %s107 = sphi 0, %s104
      %s108 = sphi 0, %s107
      %s124 = sphi 0, %s108
      %s134 = sphi 0, %s136
      %s137 = sphi 0, %s134
      %s138 = sphi 0, %s137
      %s154 = sphi 0, %s138
    $region4: #{tpu_custom_call.1} parent=1 // loop_header_branch
      %23 = sbr.rel (%p21) target = $region8
    $region5: #{tpu_custom_call.1} parent=1 // loop_body
      %s25 = ssub.s32 %s20, 1
      %s26 = ssub.s32 %s20, 2
      %s36 = sadd.s32 1, %s29
      %p37 = scmp.ge.s32.totalorder %s36, 1
      %s38 = scalar_select %p37, 0, %s36
      %s39 = sadd.s32 1, %s28
      %s40 = scalar_select %p37, %s39, %s28
      %p41 = scmp.ge.s32.totalorder %s40, 4
      %s42 = scalar_select %p41, 0, %s40
      %s43 = sadd.s32 1, %s27
      %s44 = scalar_select %p41, %s43, %s27
      %p45 = scmp.ge.s32.totalorder %s44, 2
      %s46 = scalar_select %p45, 0, %s44
      %s48 = sadd.s32 %s47, 1
      %p51 = scmp.eq.s32.totalorder %s20, 7
      %p52 = scmp.ne.s32.totalorder %s47, %s49
      %p53 = scmp.eq.s32.totalorder %s20, 0
      %p54 = por %p52, %p53
      %p55 = scmp.ne.s32.totalorder %s47, %s49
      %p56 = scmp.eq.s32.totalorder %s25, 7
      %p57 = por %p55, %p56
      %p58 = scmp.ne.s32.totalorder %s49, %s50
      %p59 = scmp.eq.s32.totalorder %s25, 0
      %p60 = por %p58, %p59
      %p61 = scmp.ne.s32.totalorder %s49, %s50
      %p62 = scmp.eq.s32.totalorder %s26, 7
      %p63 = por %p61, %p62
      %p65 = scmp.ne.s32.totalorder %s50, %s64
      %p66 = scmp.eq.s32.totalorder %s26, 0
      %p67 = por %p65, %p66
      %s68 = ssub.s32 %s27, %s46
      %s69 = ssub.s32 %s28, %s42
      %s70 = sor.u32 %s68, %s69
      %s71 = ssub.s32 %s29, %s38
      %s72 = sor.u32 %s70, %s71
      %p73 = scmp.eq.s32.totalorder %s72, 0
      %s75 = sadd.s32 %s74, 1
      %s76 = scalar_select %p73, %s74, %s75
      %p79 = pneg %p73
      %p80 = scmp.eq.s32.totalorder %s20, 7
      %p81 = por %p79, %p80
      %p82 = scmp.ne.s32.totalorder %s74, %s77
      %p83 = scmp.eq.s32.totalorder %s20, 0
      %p84 = por %p82, %p83
      %p85 = scmp.ne.s32.totalorder %s74, %s77
      %p86 = scmp.eq.s32.totalorder %s25, 7
      %p87 = por %p85, %p86
      %p88 = scmp.ne.s32.totalorder %s77, %s78
      %p89 = scmp.eq.s32.totalorder %s25, 0
      %p90 = por %p88, %p89
      %p91 = scmp.ne.s32.totalorder %s77, %s78
      %p92 = scmp.eq.s32.totalorder %s26, 7
      %p93 = por %p91, %p92
      %p95 = scmp.ne.s32.totalorder %s78, %s94
      %p96 = scmp.eq.s32.totalorder %s26, 0
      %p97 = por %p95, %p96
      %s98 = ssub.s32 %s27, %s46
      %s99 = ssub.s32 %s28, %s42
      %s100 = sor.u32 %s98, %s99
      %s101 = ssub.s32 %s29, %s38
      %s102 = sor.u32 %s100, %s101
      %p103 = scmp.eq.s32.totalorder %s102, 0
      %s105 = sadd.s32 %s104, 1
      %s106 = scalar_select %p103, %s104, %s105
      %p109 = pneg %p103
      %p110 = scmp.eq.s32.totalorder %s20, 7
      %p111 = por %p109, %p110
      %p112 = scmp.ne.s32.totalorder %s104, %s107
      %p113 = scmp.eq.s32.totalorder %s20, 0
      %p114 = por %p112, %p113
      %p115 = scmp.ne.s32.totalorder %s104, %s107
      %p116 = scmp.eq.s32.totalorder %s25, 7
      %p117 = por %p115, %p116
      %p118 = scmp.ne.s32.totalorder %s107, %s108
      %p119 = scmp.eq.s32.totalorder %s25, 0
      %p120 = por %p118, %p119
      %p121 = scmp.ne.s32.totalorder %s107, %s108
      %p122 = scmp.eq.s32.totalorder %s26, 7
      %p123 = por %p121, %p122
      %p125 = scmp.ne.s32.totalorder %s108, %s124
      %p126 = scmp.eq.s32.totalorder %s26, 0
      %p127 = por %p125, %p126
      %s128 = ssub.s32 %s27, %s46
      %s129 = ssub.s32 %s28, %s42
      %s130 = sor.u32 %s128, %s129
      %s131 = ssub.s32 %s29, %s38
      %s132 = sor.u32 %s130, %s131
      %p133 = scmp.eq.s32.totalorder %s132, 0
      %s135 = sadd.s32 %s134, 1
      %s136 = scalar_select %p133, %s134, %s135
      %p139 = pneg %p133
      %p140 = scmp.eq.s32.totalorder %s20, 7
      %p141 = por %p139, %p140
      %p142 = scmp.ne.s32.totalorder %s134, %s137
      %p143 = scmp.eq.s32.totalorder %s20, 0
      %p144 = por %p142, %p143
      %p145 = scmp.ne.s32.totalorder %s134, %s137
      %p146 = scmp.eq.s32.totalorder %s25, 7
      %p147 = por %p145, %p146
      %p148 = scmp.ne.s32.totalorder %s137, %s138
      %p149 = scmp.eq.s32.totalorder %s25, 0
      %p150 = por %p148, %p149
      %p151 = scmp.ne.s32.totalorder %s137, %s138
      %p152 = scmp.eq.s32.totalorder %s26, 7
      %p153 = por %p151, %p152
      %p155 = scmp.ne.s32.totalorder %s138, %s154
      %p156 = scmp.eq.s32.totalorder %s26, 0
      %p157 = por %p155, %p156
      %p158 = scmp.le.s32.totalorder 1, %s20
      %p159 = scmp.lt.s32.totalorder %s20, 9
      %p160 = pnand %p158, %p159
      %p161 = pneg %p160
      // Predicated region
      $region9: #{tpu_custom_call.1} parent=5 // pred_check
        _
      $region10: #{tpu_custom_call.1} parent=5 // pred_check_branch
        %163 = sbr.rel (%p160) target = $region12
      $region11: #{tpu_custom_call.1} parent=5 // pred_region
        %s164 = ssub.s32 %s20, 1
        // Predicated region
        $region13: #{tpu_custom_call.1} parent=11 // pred_check
          %p165 = pneg %p60
        $region14: #{tpu_custom_call.1} parent=11 // pred_check_branch
          %167 = sbr.rel (%p165) target = $region16
        $region15: #{tpu_custom_call.1} parent=11 // pred_region
          %169 = vsyncadd [#allocation5], 0
          %s171 = sshll.u32 %s0, 4
          %s172 = int_to_ptr.hbm [resolvable:$true] %s171
          %174 = dma.hbm_to_smem %s172, 64, [#allocation2], [#allocation5]
        $region16: #{tpu_custom_call.1} parent=11 // pred_fallthru
          _
      $region12: #{tpu_custom_call.1} parent=5 // pred_fallthru
        _
      %p175 = scmp.lt.s32.totalorder %s20, 8
      // Predicated region
      $region17: #{tpu_custom_call.1} parent=5 // pred_check
        %p176 = pneg %p175
      $region18: #{tpu_custom_call.1} parent=5 // pred_check_branch
        %178 = sbr.rel (%p176) target = $region20
      $region19: #{tpu_custom_call.1} parent=5 // pred_region
        // Predicated region
        $region21: #{tpu_custom_call.1} parent=19 // pred_check
          %p179 = pneg %p84
        $region22: #{tpu_custom_call.1} parent=19 // pred_check_branch
          %181 = sbr.rel (%p179) target = $region24
        $region23: #{tpu_custom_call.1} parent=19 // pred_region
          %s182 = sand.u32 %s74, 1
          %s183 = scalar_lea.sflag [#allocation3], %s182
          %s184 = sand.u32 %s74, 1
          %s185 = smul.addr %s184, 32
          %s186 = scalar_lea.vmem [#allocation6], %s185
          %188 = vsyncadd %s183, 0
          %s189 = smul.addr %s29, 4
          %s190 = smul.addr %s28, 4
          %s191 = sadd.s32 %s189, %s190
          %s192 = smul.addr %s27, 16
          %s193 = sadd.s32 %s191, %s192
          %s194 = smul.addr %s193, 8
          %s195 = scalar_lea.hbm %s1, %s194
          %s197 = sshll.u32 %s195, 4
          %s198 = int_to_ptr.hbm [resolvable:$true] %s197
          %s199 = sshll.u32 %s186, 4
          %s200 = int_to_ptr.vmem [resolvable:$true] %s199
          %202 = dma.hbm_to_vmem [thread:$0]  %s198, 512, %s200, %s183
        $region24: #{tpu_custom_call.1} parent=19 // pred_fallthru
          _
      $region20: #{tpu_custom_call.1} parent=5 // pred_fallthru
        _
      %p203 = scmp.le.s32.totalorder 1, %s20
      %p204 = scmp.lt.s32.totalorder %s20, 9
      %p205 = pnand %p203, %p204
      %p206 = pneg %p205
      // Predicated region
      $region25: #{tpu_custom_call.1} parent=5 // pred_check
        _
      $region26: #{tpu_custom_call.1} parent=5 // pred_check_branch
        %208 = sbr.rel (%p205) target = $region28
      $region27: #{tpu_custom_call.1} parent=5 // pred_region
        %s209 = ssub.s32 %s20, 1
        // Predicated region
        $region29: #{tpu_custom_call.1} parent=27 // pred_check
          %p210 = pneg %p60
        $region30: #{tpu_custom_call.1} parent=27 // pred_check_branch
          %212 = sbr.rel (%p210) target = $region32
        $region31: #{tpu_custom_call.1} parent=27 // pred_region
          %214 = dma.done [#allocation5], 64
        $region32: #{tpu_custom_call.1} parent=27 // pred_fallthru
          _
        %s215 = sand.u32 %s77, 1
        %s216 = scalar_lea.sflag [#allocation3], %s215
        %s217 = sand.u32 %s77, 1
        %s218 = smul.addr %s217, 32
        %s219 = scalar_lea.vmem [#allocation6], %s218
        // Predicated region
        $region33: #{tpu_custom_call.1} parent=27 // pred_check
          %p220 = pneg %p90
        $region34: #{tpu_custom_call.1} parent=27 // pred_check_branch
          %222 = sbr.rel (%p220) target = $region36
        $region35: #{tpu_custom_call.1} parent=27 // pred_region
          %224 = dma.done %s216, 512
        $region36: #{tpu_custom_call.1} parent=27 // pred_fallthru
          _
        %225 = sfence
        %p226 = pneg %p60
        %p227 = pneg %p57
        %s228 = sand.u32 %s77, 1
        %s229 = scalar_lea.sflag [#allocation3], %s228
        %s230 = sand.u32 %s77, 1
        %s231 = smul.addr %s230, 32
        %s232 = scalar_lea.vmem [#allocation6], %s231
        %p233 = pneg %p90
        %p234 = pneg %p87
        %p235 = pneg %p120
        %p236 = pneg %p117
        %s237 = sand.u32 %s107, 1
        %s238 = scalar_lea.sflag [#allocation4], %s237
        %s239 = sand.u32 %s107, 1
        %s240 = smul.addr %s239, 32
        %s241 = scalar_lea.vmem [#allocation7], %s240
        %p242 = pneg %p150
        %p243 = pneg %p147
        %s244 = sand.u32 %s137, 1
        %s245 = scalar_lea.sflag [#allocation9], %s244
        %s246 = sand.u32 %s137, 1
        %s247 = smul.addr %s246, 32
        %s248 = scalar_lea.vmem [#allocation8], %s247
        %s249 = smul.u32 %s31, 128
        %s250 = sld [smem:[#allocation2 + %s249]]
        %s251 = sadd.s32 %s249, 1
        %s252 = sld [smem:[#allocation2 + %s251]]
        %s253 = sadd.s32 %s249, 2
        %s254 = sld [smem:[#allocation2 + %s253]]
        %s255 = sadd.s32 %s249, 3
        %s256 = sld [smem:[#allocation2 + %s255]]
        %s257 = sadd.s32 %s249, 4
        %s258 = sld [smem:[#allocation2 + %s257]]
        %s259 = sadd.s32 %s249, 5
        %s260 = sld [smem:[#allocation2 + %s259]]
        %s261 = sadd.s32 %s249, 6
        %s262 = sld [smem:[#allocation2 + %s261]]
        %s263 = sadd.s32 %s249, 7
        %s264 = sld [smem:[#allocation2 + %s263]]
        %s265 = sadd.s32 %s249, 8
        %s266 = sld [smem:[#allocation2 + %s265]]
        %s267 = sadd.s32 %s249, 9
        %s268 = sld [smem:[#allocation2 + %s267]]
        %s269 = sadd.s32 %s249, 10
        %s270 = sld [smem:[#allocation2 + %s269]]
        %s271 = sadd.s32 %s249, 11
        %s272 = sld [smem:[#allocation2 + %s271]]
        %s273 = sadd.s32 %s249, 12
        %s274 = sld [smem:[#allocation2 + %s273]]
        %s275 = sadd.s32 %s249, 13
        %s276 = sld [smem:[#allocation2 + %s275]]
        %s277 = sadd.s32 %s249, 14
        %s278 = sld [smem:[#allocation2 + %s277]]
        %s279 = sadd.s32 %s249, 15
        %s280 = sld [smem:[#allocation2 + %s279]]
        %s281 = sadd.s32 %s249, 16
        %s282 = sld [smem:[#allocation2 + %s281]]
        %s283 = sadd.s32 %s249, 17
        %s284 = sld [smem:[#allocation2 + %s283]]
        %s285 = sadd.s32 %s249, 18
        %s286 = sld [smem:[#allocation2 + %s285]]
        %s287 = sadd.s32 %s249, 19
        %s288 = sld [smem:[#allocation2 + %s287]]
        %s289 = sadd.s32 %s249, 20
        %s290 = sld [smem:[#allocation2 + %s289]]
        %s291 = sadd.s32 %s249, 21
        %s292 = sld [smem:[#allocation2 + %s291]]
        %s293 = sadd.s32 %s249, 22
        %s294 = sld [smem:[#allocation2 + %s293]]
        %s295 = sadd.s32 %s249, 23
        %s296 = sld [smem:[#allocation2 + %s295]]
        %s297 = sadd.s32 %s249, 24
        %s298 = sld [smem:[#allocation2 + %s297]]
        %s299 = sadd.s32 %s249, 25
        %s300 = sld [smem:[#allocation2 + %s299]]
        %s301 = sadd.s32 %s249, 26
        %s302 = sld [smem:[#allocation2 + %s301]]
        %s303 = sadd.s32 %s249, 27
        %s304 = sld [smem:[#allocation2 + %s303]]
        %s305 = sadd.s32 %s249, 28
        %s306 = sld [smem:[#allocation2 + %s305]]
        %s307 = sadd.s32 %s249, 29
        %s308 = sld [smem:[#allocation2 + %s307]]
        %s309 = sadd.s32 %s249, 30
        %s310 = sld [smem:[#allocation2 + %s309]]
        %s311 = sadd.s32 %s249, 31
        %s312 = sld [smem:[#allocation2 + %s311]]
        %s313 = sadd.s32 %s249, 32
        %s314 = sld [smem:[#allocation2 + %s313]]
        %s315 = sadd.s32 %s249, 33
        %s316 = sld [smem:[#allocation2 + %s315]]
        %s317 = sadd.s32 %s249, 34
        %s318 = sld [smem:[#allocation2 + %s317]]
        %s319 = sadd.s32 %s249, 35
        %s320 = sld [smem:[#allocation2 + %s319]]
        %s321 = sadd.s32 %s249, 36
        %s322 = sld [smem:[#allocation2 + %s321]]
        %s323 = sadd.s32 %s249, 37
        %s324 = sld [smem:[#allocation2 + %s323]]
        %s325 = sadd.s32 %s249, 38
        %s326 = sld [smem:[#allocation2 + %s325]]
        %s327 = sadd.s32 %s249, 39
        %s328 = sld [smem:[#allocation2 + %s327]]
        %s329 = sadd.s32 %s249, 40
        %s330 = sld [smem:[#allocation2 + %s329]]
        %s331 = sadd.s32 %s249, 41
        %s332 = sld [smem:[#allocation2 + %s331]]
        %s333 = sadd.s32 %s249, 42
        %s334 = sld [smem:[#allocation2 + %s333]]
        %s335 = sadd.s32 %s249, 43
        %s336 = sld [smem:[#allocation2 + %s335]]
        %s337 = sadd.s32 %s249, 44
        %s338 = sld [smem:[#allocation2 + %s337]]
        %s339 = sadd.s32 %s249, 45
        %s340 = sld [smem:[#allocation2 + %s339]]
        %s341 = sadd.s32 %s249, 46
        %s342 = sld [smem:[#allocation2 + %s341]]
        %s343 = sadd.s32 %s249, 47
        %s344 = sld [smem:[#allocation2 + %s343]]
        %s345 = sadd.s32 %s249, 48
        %s346 = sld [smem:[#allocation2 + %s345]]
        %s347 = sadd.s32 %s249, 49
        %s348 = sld [smem:[#allocation2 + %s347]]
        %s349 = sadd.s32 %s249, 50
        %s350 = sld [smem:[#allocation2 + %s349]]
        %s351 = sadd.s32 %s249, 51
        %s352 = sld [smem:[#allocation2 + %s351]]
        %s353 = sadd.s32 %s249, 52
        %s354 = sld [smem:[#allocation2 + %s353]]
        %s355 = sadd.s32 %s249, 53
        %s356 = sld [smem:[#allocation2 + %s355]]
        %s357 = sadd.s32 %s249, 54
        %s358 = sld [smem:[#allocation2 + %s357]]
        %s359 = sadd.s32 %s249, 55
        %s360 = sld [smem:[#allocation2 + %s359]]
        %s361 = sadd.s32 %s249, 56
        %s362 = sld [smem:[#allocation2 + %s361]]
        %s363 = sadd.s32 %s249, 57
        %s364 = sld [smem:[#allocation2 + %s363]]
        %s365 = sadd.s32 %s249, 58
        %s366 = sld [smem:[#allocation2 + %s365]]
        %v367 = vld [vmem:[%s219] sm:$0xff]
        %v368 = vld [vmem:[%s219 + $0x8] sm:$0xff]
        %v369 = vld [vmem:[%s219 + $0x10] sm:$0xff]
        %v370 = vld [vmem:[%s219 + $0x18] sm:$0xff]
        %v371 = vstv %s366
        %v372 = vsub.f32 %v367, %v371
        %v373 = vsub.f32 %v368, %v371
        %v374 = vsub.f32 %v369, %v371
        %v375 = vsub.f32 %v370, %v371
        %v376 = vmax.f32 %v372, -128.0
        %v377 = vmax.f32 %v373, -128.0
        %v378 = vmax.f32 %v374, -128.0
        %v379 = vmax.f32 %v375, -128.0
        %v380 = vmin.f32 %v376, 127.0
        %v381 = vmin.f32 %v377, 127.0
        %v382 = vmin.f32 %v378, 127.0
        %v383 = vmin.f32 %v379, 127.0
        %v384 = vround.ne.pseudo %v380
        %v385 = vround.ne.pseudo %v381
        %v386 = vround.ne.pseudo %v382
        %v387 = vround.ne.pseudo %v383
        %v388 = vadd.f32 %v384, %v371
        %v389 = vadd.f32 %v385, %v371
        %v390 = vadd.f32 %v386, %v371
        %v391 = vadd.f32 %v387, %v371
        %392 = vst [vmem:[%s241] sm:$0xff] %v388
        %393 = vst [vmem:[%s241 + $0x8] sm:$0xff] %v389
        %394 = vst [vmem:[%s241 + $0x10] sm:$0xff] %v390
        %395 = vst [vmem:[%s241 + $0x18] sm:$0xff] %v391
        %v396 = vsub.f32 %v388, 0.5
        %v397 = vsub.f32 %v389, 0.5
        %v398 = vsub.f32 %v390, 0.5
        %v399 = vsub.f32 %v391, 0.5
        %v400 = vstv %s250
        %v401 = vmul.f32 %v400, %v396
        %v402 = vmul.f32 %v400, %v397
        %v403 = vmul.f32 %v400, %v398
        %v404 = vmul.f32 %v400, %v399
        %v405 = vstv %s316
        %v406 = vadd.f32 %v401, %v405
        %v407 = vadd.f32 %v402, %v405
        %v408 = vadd.f32 %v403, %v405
        %v409 = vadd.f32 %v404, %v405
        %v410 = vtanh.pop %v406
        %v411 = vtanh.pop %v407
        %v412 = vtanh.pop %v408
        %v413 = vtanh.pop %v409
        %v414 = vstv %s342
        %v415 = vmul.f32 %v414, %v410
        %v416 = vmul.f32 %v414, %v411
        %v417 = vmul.f32 %v414, %v412
        %v418 = vmul.f32 %v414, %v413
        %v419 = vadd.f32 %v406, %v415
        %v420 = vadd.f32 %v407, %v416
        %v421 = vadd.f32 %v408, %v417
        %v422 = vadd.f32 %v409, %v418
        %v423 = vstv %s252
        %v424 = vmul.f32 %v423, %v396
        %v425 = vmul.f32 %v423, %v397
        %v426 = vmul.f32 %v423, %v398
        %v427 = vmul.f32 %v423, %v399
        %v428 = vstv %s318
        %v429 = vadd.f32 %v424, %v428
        %v430 = vadd.f32 %v425, %v428
        %v431 = vadd.f32 %v426, %v428
        %v432 = vadd.f32 %v427, %v428
        %v433 = vtanh.pop %v429
        %v434 = vtanh.pop %v430
        %v435 = vtanh.pop %v431
        %v436 = vtanh.pop %v432
        %v437 = vstv %s344
        %v438 = vmul.f32 %v437, %v433
        %v439 = vmul.f32 %v437, %v434
        %v440 = vmul.f32 %v437, %v435
        %v441 = vmul.f32 %v437, %v436
        %v442 = vadd.f32 %v429, %v438
        %v443 = vadd.f32 %v430, %v439
        %v444 = vadd.f32 %v431, %v440
        %v445 = vadd.f32 %v432, %v441
        %v446 = vstv %s254
        %v447 = vmul.f32 %v446, %v396
        %v448 = vmul.f32 %v446, %v397
        %v449 = vmul.f32 %v446, %v398
        %v450 = vmul.f32 %v446, %v399
        %v451 = vstv %s320
        %v452 = vadd.f32 %v447, %v451
        %v453 = vadd.f32 %v448, %v451
        %v454 = vadd.f32 %v449, %v451
        %v455 = vadd.f32 %v450, %v451
        %v456 = vtanh.pop %v452
        %v457 = vtanh.pop %v453
        %v458 = vtanh.pop %v454
        %v459 = vtanh.pop %v455
        %v460 = vstv %s346
        %v461 = vmul.f32 %v460, %v456
        %v462 = vmul.f32 %v460, %v457
        %v463 = vmul.f32 %v460, %v458
        %v464 = vmul.f32 %v460, %v459
        %v465 = vadd.f32 %v452, %v461
        %v466 = vadd.f32 %v453, %v462
        %v467 = vadd.f32 %v454, %v463
        %v468 = vadd.f32 %v455, %v464
        %v469 = vstv %s256
        %v470 = vmul.f32 %v469, %v419
        %v471 = vmul.f32 %v469, %v420
        %v472 = vmul.f32 %v469, %v421
        %v473 = vmul.f32 %v469, %v422
        %v474 = vstv %s258
        %v475 = vmul.f32 %v474, %v442
        %v476 = vmul.f32 %v474, %v443
        %v477 = vmul.f32 %v474, %v444
        %v478 = vmul.f32 %v474, %v445
        %v479 = vadd.f32 %v470, %v475
        %v480 = vadd.f32 %v471, %v476
        %v481 = vadd.f32 %v472, %v477
        %v482 = vadd.f32 %v473, %v478
        %v483 = vstv %s260
        %v484 = vmul.f32 %v483, %v465
        %v485 = vmul.f32 %v483, %v466
        %v486 = vmul.f32 %v483, %v467
        %v487 = vmul.f32 %v483, %v468
        %v488 = vadd.f32 %v479, %v484
        %v489 = vadd.f32 %v480, %v485
        %v490 = vadd.f32 %v481, %v486
        %v491 = vadd.f32 %v482, %v487
        %v492 = vstv %s322
        %v493 = vadd.f32 %v488, %v492
        %v494 = vadd.f32 %v489, %v492
        %v495 = vadd.f32 %v490, %v492
        %v496 = vadd.f32 %v491, %v492
        %v497 = vtanh.pop %v493
        %v498 = vtanh.pop %v494
        %v499 = vtanh.pop %v495
        %v500 = vtanh.pop %v496
        %v501 = vstv %s348
        %v502 = vmul.f32 %v501, %v497
        %v503 = vmul.f32 %v501, %v498
        %v504 = vmul.f32 %v501, %v499
        %v505 = vmul.f32 %v501, %v500
        %v506 = vadd.f32 %v493, %v502
        %v507 = vadd.f32 %v494, %v503
        %v508 = vadd.f32 %v495, %v504
        %v509 = vadd.f32 %v496, %v505
        %v510 = vstv %s262
        %v511 = vmul.f32 %v510, %v419
        %v512 = vmul.f32 %v510, %v420
        %v513 = vmul.f32 %v510, %v421
        %v514 = vmul.f32 %v510, %v422
        %v515 = vstv %s264
        %v516 = vmul.f32 %v515, %v442
        %v517 = vmul.f32 %v515, %v443
        %v518 = vmul.f32 %v515, %v444
        %v519 = vmul.f32 %v515, %v445
        %v520 = vadd.f32 %v511, %v516
        %v521 = vadd.f32 %v512, %v517
        %v522 = vadd.f32 %v513, %v518
        %v523 = vadd.f32 %v514, %v519
        %v524 = vstv %s266
        %v525 = vmul.f32 %v524, %v465
        %v526 = vmul.f32 %v524, %v466
        %v527 = vmul.f32 %v524, %v467
        %v528 = vmul.f32 %v524, %v468
        %v529 = vadd.f32 %v520, %v525
        %v530 = vadd.f32 %v521, %v526
        %v531 = vadd.f32 %v522, %v527
        %v532 = vadd.f32 %v523, %v528
        %v533 = vstv %s324
        %v534 = vadd.f32 %v529, %v533
        %v535 = vadd.f32 %v530, %v533
        %v536 = vadd.f32 %v531, %v533
        %v537 = vadd.f32 %v532, %v533
        %v538 = vtanh.pop %v534
        %v539 = vtanh.pop %v535
        %v540 = vtanh.pop %v536
        %v541 = vtanh.pop %v537
        %v542 = vstv %s350
        %v543 = vmul.f32 %v542, %v538
        %v544 = vmul.f32 %v542, %v539
        %v545 = vmul.f32 %v542, %v540
        %v546 = vmul.f32 %v542, %v541
        %v547 = vadd.f32 %v534, %v543
        %v548 = vadd.f32 %v535, %v544
        %v549 = vadd.f32 %v536, %v545
        %v550 = vadd.f32 %v537, %v546
        %v551 = vstv %s268
        %v552 = vmul.f32 %v551, %v419
        %v553 = vmul.f32 %v551, %v420
        %v554 = vmul.f32 %v551, %v421
        %v555 = vmul.f32 %v551, %v422
        %v556 = vstv %s270
        %v557 = vmul.f32 %v556, %v442
        %v558 = vmul.f32 %v556, %v443
        %v559 = vmul.f32 %v556, %v444
        %v560 = vmul.f32 %v556, %v445
        %v561 = vadd.f32 %v552, %v557
        %v562 = vadd.f32 %v553, %v558
        %v563 = vadd.f32 %v554, %v559
        %v564 = vadd.f32 %v555, %v560
        %v565 = vstv %s272
        %v566 = vmul.f32 %v565, %v465
        %v567 = vmul.f32 %v565, %v466
        %v568 = vmul.f32 %v565, %v467
        %v569 = vmul.f32 %v565, %v468
        %v570 = vadd.f32 %v561, %v566
        %v571 = vadd.f32 %v562, %v567
        %v572 = vadd.f32 %v563, %v568
        %v573 = vadd.f32 %v564, %v569
        %v574 = vstv %s326
        %v575 = vadd.f32 %v570, %v574
        %v576 = vadd.f32 %v571, %v574
        %v577 = vadd.f32 %v572, %v574
        %v578 = vadd.f32 %v573, %v574
        %v579 = vtanh.pop %v575
        %v580 = vtanh.pop %v576
        %v581 = vtanh.pop %v577
        %v582 = vtanh.pop %v578
        %v583 = vstv %s352
        %v584 = vmul.f32 %v583, %v579
        %v585 = vmul.f32 %v583, %v580
        %v586 = vmul.f32 %v583, %v581
        %v587 = vmul.f32 %v583, %v582
        %v588 = vadd.f32 %v575, %v584
        %v589 = vadd.f32 %v576, %v585
        %v590 = vadd.f32 %v577, %v586
        %v591 = vadd.f32 %v578, %v587
        %v592 = vstv %s274
        %v593 = vmul.f32 %v592, %v506
        %v594 = vmul.f32 %v592, %v507
        %v595 = vmul.f32 %v592, %v508
        %v596 = vmul.f32 %v592, %v509
        %v597 = vstv %s276
        %v598 = vmul.f32 %v597, %v547
        %v599 = vmul.f32 %v597, %v548
        %v600 = vmul.f32 %v597, %v549
        %v601 = vmul.f32 %v597, %v550
        %v602 = vadd.f32 %v593, %v598
        %v603 = vadd.f32 %v594, %v599
        %v604 = vadd.f32 %v595, %v600
        %v605 = vadd.f32 %v596, %v601
        %v606 = vstv %s278
        %v607 = vmul.f32 %v606, %v588
        %v608 = vmul.f32 %v606, %v589
        %v609 = vmul.f32 %v606, %v590
        %v610 = vmul.f32 %v606, %v591
        %v611 = vadd.f32 %v602, %v607
        %v612 = vadd.f32 %v603, %v608
        %v613 = vadd.f32 %v604, %v609
        %v614 = vadd.f32 %v605, %v610
        %v615 = vstv %s328
        %v616 = vadd.f32 %v611, %v615
        %v617 = vadd.f32 %v612, %v615
        %v618 = vadd.f32 %v613, %v615
        %v619 = vadd.f32 %v614, %v615
        %v620 = vtanh.pop %v616
        %v621 = vtanh.pop %v617
        %v622 = vtanh.pop %v618
        %v623 = vtanh.pop %v619
        %v624 = vstv %s354
        %v625 = vmul.f32 %v624, %v620
        %v626 = vmul.f32 %v624, %v621
        %v627 = vmul.f32 %v624, %v622
        %v628 = vmul.f32 %v624, %v623
        %v629 = vadd.f32 %v616, %v625
        %v630 = vadd.f32 %v617, %v626
        %v631 = vadd.f32 %v618, %v627
        %v632 = vadd.f32 %v619, %v628
        %v633 = vstv %s280
        %v634 = vmul.f32 %v633, %v506
        %v635 = vmul.f32 %v633, %v507
        %v636 = vmul.f32 %v633, %v508
        %v637 = vmul.f32 %v633, %v509
        %v638 = vstv %s282
        %v639 = vmul.f32 %v638, %v547
        %v640 = vmul.f32 %v638, %v548
        %v641 = vmul.f32 %v638, %v549
        %v642 = vmul.f32 %v638, %v550
        %v643 = vadd.f32 %v634, %v639
        %v644 = vadd.f32 %v635, %v640
        %v645 = vadd.f32 %v636, %v641
        %v646 = vadd.f32 %v637, %v642
        %v647 = vstv %s284
        %v648 = vmul.f32 %v647, %v588
        %v649 = vmul.f32 %v647, %v589
        %v650 = vmul.f32 %v647, %v590
        %v651 = vmul.f32 %v647, %v591
        %v652 = vadd.f32 %v643, %v648
        %v653 = vadd.f32 %v644, %v649
        %v654 = vadd.f32 %v645, %v650
        %v655 = vadd.f32 %v646, %v651
        %v656 = vstv %s330
        %v657 = vadd.f32 %v652, %v656
        %v658 = vadd.f32 %v653, %v656
        %v659 = vadd.f32 %v654, %v656
        %v660 = vadd.f32 %v655, %v656
        %v661 = vtanh.pop %v657
        %v662 = vtanh.pop %v658
        %v663 = vtanh.pop %v659
        %v664 = vtanh.pop %v660
        %v665 = vstv %s356
        %v666 = vmul.f32 %v665, %v661
        %v667 = vmul.f32 %v665, %v662
        %v668 = vmul.f32 %v665, %v663
        %v669 = vmul.f32 %v665, %v664
        %v670 = vadd.f32 %v657, %v666
        %v671 = vadd.f32 %v658, %v667
        %v672 = vadd.f32 %v659, %v668
        %v673 = vadd.f32 %v660, %v669
        %v674 = vstv %s286
        %v675 = vmul.f32 %v674, %v506
        %v676 = vmul.f32 %v674, %v507
        %v677 = vmul.f32 %v674, %v508
        %v678 = vmul.f32 %v674, %v509
        %v679 = vstv %s288
        %v680 = vmul.f32 %v679, %v547
        %v681 = vmul.f32 %v679, %v548
        %v682 = vmul.f32 %v679, %v549
        %v683 = vmul.f32 %v679, %v550
        %v684 = vadd.f32 %v675, %v680
        %v685 = vadd.f32 %v676, %v681
        %v686 = vadd.f32 %v677, %v682
        %v687 = vadd.f32 %v678, %v683
        %v688 = vstv %s290
        %v689 = vmul.f32 %v688, %v588
        %v690 = vmul.f32 %v688, %v589
        %v691 = vmul.f32 %v688, %v590
        %v692 = vmul.f32 %v688, %v591
        %v693 = vadd.f32 %v684, %v689
        %v694 = vadd.f32 %v685, %v690
        %v695 = vadd.f32 %v686, %v691
        %v696 = vadd.f32 %v687, %v692
        %v697 = vstv %s332
        %v698 = vadd.f32 %v693, %v697
        %v699 = vadd.f32 %v694, %v697
        %v700 = vadd.f32 %v695, %v697
        %v701 = vadd.f32 %v696, %v697
        %v702 = vtanh.pop %v698
        %v703 = vtanh.pop %v699
        %v704 = vtanh.pop %v700
        %v705 = vtanh.pop %v701
        %v706 = vstv %s358
        %v707 = vmul.f32 %v706, %v702
        %v708 = vmul.f32 %v706, %v703
        %v709 = vmul.f32 %v706, %v704
        %v710 = vmul.f32 %v706, %v705
        %v711 = vadd.f32 %v698, %v707
        %v712 = vadd.f32 %v699, %v708
        %v713 = vadd.f32 %v700, %v709
        %v714 = vadd.f32 %v701, %v710
        %v715 = vstv %s292
        %v716 = vmul.f32 %v715, %v629
        %v717 = vmul.f32 %v715, %v630
        %v718 = vmul.f32 %v715, %v631
        %v719 = vmul.f32 %v715, %v632
        %v720 = vstv %s294
        %v721 = vmul.f32 %v720, %v670
        %v722 = vmul.f32 %v720, %v671
        %v723 = vmul.f32 %v720, %v672
        %v724 = vmul.f32 %v720, %v673
        %v725 = vadd.f32 %v716, %v721
        %v726 = vadd.f32 %v717, %v722
        %v727 = vadd.f32 %v718, %v723
        %v728 = vadd.f32 %v719, %v724
        %v729 = vstv %s296
        %v730 = vmul.f32 %v729, %v711
        %v731 = vmul.f32 %v729, %v712
        %v732 = vmul.f32 %v729, %v713
        %v733 = vmul.f32 %v729, %v714
        %v734 = vadd.f32 %v725, %v730
        %v735 = vadd.f32 %v726, %v731
        %v736 = vadd.f32 %v727, %v732
        %v737 = vadd.f32 %v728, %v733
        %v738 = vstv %s334
        %v739 = vadd.f32 %v734, %v738
        %v740 = vadd.f32 %v735, %v738
        %v741 = vadd.f32 %v736, %v738
        %v742 = vadd.f32 %v737, %v738
        %v743 = vtanh.pop %v739
        %v744 = vtanh.pop %v740
        %v745 = vtanh.pop %v741
        %v746 = vtanh.pop %v742
        %v747 = vstv %s360
        %v748 = vmul.f32 %v747, %v743
        %v749 = vmul.f32 %v747, %v744
        %v750 = vmul.f32 %v747, %v745
        %v751 = vmul.f32 %v747, %v746
        %v752 = vadd.f32 %v739, %v748
        %v753 = vadd.f32 %v740, %v749
        %v754 = vadd.f32 %v741, %v750
        %v755 = vadd.f32 %v742, %v751
        %v756 = vstv %s298
        %v757 = vmul.f32 %v756, %v629
        %v758 = vmul.f32 %v756, %v630
        %v759 = vmul.f32 %v756, %v631
        %v760 = vmul.f32 %v756, %v632
        %v761 = vstv %s300
        %v762 = vmul.f32 %v761, %v670
        %v763 = vmul.f32 %v761, %v671
        %v764 = vmul.f32 %v761, %v672
        %v765 = vmul.f32 %v761, %v673
        %v766 = vadd.f32 %v757, %v762
        %v767 = vadd.f32 %v758, %v763
        %v768 = vadd.f32 %v759, %v764
        %v769 = vadd.f32 %v760, %v765
        %v770 = vstv %s302
        %v771 = vmul.f32 %v770, %v711
        %v772 = vmul.f32 %v770, %v712
        %v773 = vmul.f32 %v770, %v713
        %v774 = vmul.f32 %v770, %v714
        %v775 = vadd.f32 %v766, %v771
        %v776 = vadd.f32 %v767, %v772
        %v777 = vadd.f32 %v768, %v773
        %v778 = vadd.f32 %v769, %v774
        %v779 = vstv %s336
        %v780 = vadd.f32 %v775, %v779
        %v781 = vadd.f32 %v776, %v779
        %v782 = vadd.f32 %v777, %v779
        %v783 = vadd.f32 %v778, %v779
        %v784 = vtanh.pop %v780
        %v785 = vtanh.pop %v781
        %v786 = vtanh.pop %v782
        %v787 = vtanh.pop %v783
        %v788 = vstv %s362
        %v789 = vmul.f32 %v788, %v784
        %v790 = vmul.f32 %v788, %v785
        %v791 = vmul.f32 %v788, %v786
        %v792 = vmul.f32 %v788, %v787
        %v793 = vadd.f32 %v780, %v789
        %v794 = vadd.f32 %v781, %v790
        %v795 = vadd.f32 %v782, %v791
        %v796 = vadd.f32 %v783, %v792
        %v797 = vstv %s304
        %v798 = vmul.f32 %v797, %v629
        %v799 = vmul.f32 %v797, %v630
        %v800 = vmul.f32 %v797, %v631
        %v801 = vmul.f32 %v797, %v632
        %v802 = vstv %s306
        %v803 = vmul.f32 %v802, %v670
        %v804 = vmul.f32 %v802, %v671
        %v805 = vmul.f32 %v802, %v672
        %v806 = vmul.f32 %v802, %v673
        %v807 = vadd.f32 %v798, %v803
        %v808 = vadd.f32 %v799, %v804
        %v809 = vadd.f32 %v800, %v805
        %v810 = vadd.f32 %v801, %v806
        %v811 = vstv %s308
        %v812 = vmul.f32 %v811, %v711
        %v813 = vmul.f32 %v811, %v712
        %v814 = vmul.f32 %v811, %v713
        %v815 = vmul.f32 %v811, %v714
        %v816 = vadd.f32 %v807, %v812
        %v817 = vadd.f32 %v808, %v813
        %v818 = vadd.f32 %v809, %v814
        %v819 = vadd.f32 %v810, %v815
        %v820 = vstv %s338
        %v821 = vadd.f32 %v816, %v820
        %v822 = vadd.f32 %v817, %v820
        %v823 = vadd.f32 %v818, %v820
        %v824 = vadd.f32 %v819, %v820
        %v825 = vtanh.pop %v821
        %v826 = vtanh.pop %v822
        %v827 = vtanh.pop %v823
        %v828 = vtanh.pop %v824
        %v829 = vstv %s364
        %v830 = vmul.f32 %v829, %v825
        %v831 = vmul.f32 %v829, %v826
        %v832 = vmul.f32 %v829, %v827
        %v833 = vmul.f32 %v829, %v828
        %v834 = vadd.f32 %v821, %v830
        %v835 = vadd.f32 %v822, %v831
        %v836 = vadd.f32 %v823, %v832
        %v837 = vadd.f32 %v824, %v833
        %v838 = vstv %s310
        %v839 = vmul.f32 %v838, %v752
        %v840 = vmul.f32 %v838, %v753
        %v841 = vmul.f32 %v838, %v754
        %v842 = vmul.f32 %v838, %v755
        %v843 = vstv %s312
        %v844 = vmul.f32 %v843, %v793
        %v845 = vmul.f32 %v843, %v794
        %v846 = vmul.f32 %v843, %v795
        %v847 = vmul.f32 %v843, %v796
        %v848 = vadd.f32 %v839, %v844
        %v849 = vadd.f32 %v840, %v845
        %v850 = vadd.f32 %v841, %v846
        %v851 = vadd.f32 %v842, %v847
        %v852 = vstv %s314
        %v853 = vmul.f32 %v852, %v834
        %v854 = vmul.f32 %v852, %v835
        %v855 = vmul.f32 %v852, %v836
        %v856 = vmul.f32 %v852, %v837
        %v857 = vadd.f32 %v848, %v853
        %v858 = vadd.f32 %v849, %v854
        %v859 = vadd.f32 %v850, %v855
        %v860 = vadd.f32 %v851, %v856
        %v861 = vstv %s340
        %v862 = vadd.f32 %v857, %v861
        %v863 = vadd.f32 %v858, %v861
        %v864 = vadd.f32 %v859, %v861
        %v865 = vadd.f32 %v860, %v861
        %v866 = vadd.f32 %v388, 0.5
        %v867 = vadd.f32 %v389, 0.5
        %v868 = vadd.f32 %v390, 0.5
        %v869 = vadd.f32 %v391, 0.5
        %v870 = vmul.f32 %v400, %v866
        %v871 = vmul.f32 %v400, %v867
        %v872 = vmul.f32 %v400, %v868
        %v873 = vmul.f32 %v400, %v869
        %v874 = vadd.f32 %v870, %v405
        %v875 = vadd.f32 %v871, %v405
        %v876 = vadd.f32 %v872, %v405
        %v877 = vadd.f32 %v873, %v405
        %v878 = vtanh.pop %v874
        %v879 = vtanh.pop %v875
        %v880 = vtanh.pop %v876
        %v881 = vtanh.pop %v877
        %v882 = vmul.f32 %v414, %v878
        %v883 = vmul.f32 %v414, %v879
        %v884 = vmul.f32 %v414, %v880
        %v885 = vmul.f32 %v414, %v881
        %v886 = vadd.f32 %v874, %v882
        %v887 = vadd.f32 %v875, %v883
        %v888 = vadd.f32 %v876, %v884
        %v889 = vadd.f32 %v877, %v885
        %v890 = vmul.f32 %v423, %v866
        %v891 = vmul.f32 %v423, %v867
        %v892 = vmul.f32 %v423, %v868
        %v893 = vmul.f32 %v423, %v869
        %v894 = vadd.f32 %v890, %v428
        %v895 = vadd.f32 %v891, %v428
        %v896 = vadd.f32 %v892, %v428
        %v897 = vadd.f32 %v893, %v428
        %v898 = vtanh.pop %v894
        %v899 = vtanh.pop %v895
        %v900 = vtanh.pop %v896
        %v901 = vtanh.pop %v897
        %v902 = vmul.f32 %v437, %v898
        %v903 = vmul.f32 %v437, %v899
        %v904 = vmul.f32 %v437, %v900
        %v905 = vmul.f32 %v437, %v901
        %v906 = vadd.f32 %v894, %v902
        %v907 = vadd.f32 %v895, %v903
        %v908 = vadd.f32 %v896, %v904
        %v909 = vadd.f32 %v897, %v905
        %v910 = vmul.f32 %v446, %v866
        %v911 = vmul.f32 %v446, %v867
        %v912 = vmul.f32 %v446, %v868
        %v913 = vmul.f32 %v446, %v869
        %v914 = vadd.f32 %v910, %v451
        %v915 = vadd.f32 %v911, %v451
        %v916 = vadd.f32 %v912, %v451
        %v917 = vadd.f32 %v913, %v451
        %v918 = vtanh.pop %v914
        %v919 = vtanh.pop %v915
        %v920 = vtanh.pop %v916
        %v921 = vtanh.pop %v917
        %v922 = vmul.f32 %v460, %v918
        %v923 = vmul.f32 %v460, %v919
        %v924 = vmul.f32 %v460, %v920
        %v925 = vmul.f32 %v460, %v921
        %v926 = vadd.f32 %v914, %v922
        %v927 = vadd.f32 %v915, %v923
        %v928 = vadd.f32 %v916, %v924
        %v929 = vadd.f32 %v917, %v925
        %v930 = vmul.f32 %v469, %v886
        %v931 = vmul.f32 %v469, %v887
        %v932 = vmul.f32 %v469, %v888
        %v933 = vmul.f32 %v469, %v889
        %v934 = vmul.f32 %v474, %v906
        %v935 = vmul.f32 %v474, %v907
        %v936 = vmul.f32 %v474, %v908
        %v937 = vmul.f32 %v474, %v909
        %v938 = vadd.f32 %v930, %v934
        %v939 = vadd.f32 %v931, %v935
        %v940 = vadd.f32 %v932, %v936
        %v941 = vadd.f32 %v933, %v937
        %v942 = vmul.f32 %v483, %v926
        %v943 = vmul.f32 %v483, %v927
        %v944 = vmul.f32 %v483, %v928
        %v945 = vmul.f32 %v483, %v929
        %v946 = vadd.f32 %v938, %v942
        %v947 = vadd.f32 %v939, %v943
        %v948 = vadd.f32 %v940, %v944
        %v949 = vadd.f32 %v941, %v945
        %v950 = vadd.f32 %v946, %v492
        %v951 = vadd.f32 %v947, %v492
        %v952 = vadd.f32 %v948, %v492
        %v953 = vadd.f32 %v949, %v492
        %v954 = vtanh.pop %v950
        %v955 = vtanh.pop %v951
        %v956 = vtanh.pop %v952
        %v957 = vtanh.pop %v953
        %v958 = vmul.f32 %v501, %v954
        %v959 = vmul.f32 %v501, %v955
        %v960 = vmul.f32 %v501, %v956
        %v961 = vmul.f32 %v501, %v957
        %v962 = vadd.f32 %v950, %v958
        %v963 = vadd.f32 %v951, %v959
        %v964 = vadd.f32 %v952, %v960
        %v965 = vadd.f32 %v953, %v961
        %v966 = vmul.f32 %v510, %v886
        %v967 = vmul.f32 %v510, %v887
        %v968 = vmul.f32 %v510, %v888
        %v969 = vmul.f32 %v510, %v889
        %v970 = vmul.f32 %v515, %v906
        %v971 = vmul.f32 %v515, %v907
        %v972 = vmul.f32 %v515, %v908
        %v973 = vmul.f32 %v515, %v909
        %v974 = vadd.f32 %v966, %v970
        %v975 = vadd.f32 %v967, %v971
        %v976 = vadd.f32 %v968, %v972
        %v977 = vadd.f32 %v969, %v973
        %v978 = vmul.f32 %v524, %v926
        %v979 = vmul.f32 %v524, %v927
        %v980 = vmul.f32 %v524, %v928
        %v981 = vmul.f32 %v524, %v929
        %v982 = vadd.f32 %v974, %v978
        %v983 = vadd.f32 %v975, %v979
        %v984 = vadd.f32 %v976, %v980
        %v985 = vadd.f32 %v977, %v981
        %v986 = vadd.f32 %v982, %v533
        %v987 = vadd.f32 %v983, %v533
        %v988 = vadd.f32 %v984, %v533
        %v989 = vadd.f32 %v985, %v533
        %v990 = vtanh.pop %v986
        %v991 = vtanh.pop %v987
        %v992 = vtanh.pop %v988
        %v993 = vtanh.pop %v989
        %v994 = vmul.f32 %v542, %v990
        %v995 = vmul.f32 %v542, %v991
        %v996 = vmul.f32 %v542, %v992
        %v997 = vmul.f32 %v542, %v993
        %v998 = vadd.f32 %v986, %v994
        %v999 = vadd.f32 %v987, %v995
        %v1000 = vadd.f32 %v988, %v996
        %v1001 = vadd.f32 %v989, %v997
        %v1002 = vmul.f32 %v551, %v886
        %v1003 = vmul.f32 %v551, %v887
        %v1004 = vmul.f32 %v551, %v888
        %v1005 = vmul.f32 %v551, %v889
        %v1006 = vmul.f32 %v556, %v906
        %v1007 = vmul.f32 %v556, %v907
        %v1008 = vmul.f32 %v556, %v908
        %v1009 = vmul.f32 %v556, %v909
        %v1010 = vadd.f32 %v1002, %v1006
        %v1011 = vadd.f32 %v1003, %v1007
        %v1012 = vadd.f32 %v1004, %v1008
        %v1013 = vadd.f32 %v1005, %v1009
        %v1014 = vmul.f32 %v565, %v926
        %v1015 = vmul.f32 %v565, %v927
        %v1016 = vmul.f32 %v565, %v928
        %v1017 = vmul.f32 %v565, %v929
        %v1018 = vadd.f32 %v1010, %v1014
        %v1019 = vadd.f32 %v1011, %v1015
        %v1020 = vadd.f32 %v1012, %v1016
        %v1021 = vadd.f32 %v1013, %v1017
        %v1022 = vadd.f32 %v1018, %v574
        %v1023 = vadd.f32 %v1019, %v574
        %v1024 = vadd.f32 %v1020, %v574
        %v1025 = vadd.f32 %v1021, %v574
        %v1026 = vtanh.pop %v1022
        %v1027 = vtanh.pop %v1023
        %v1028 = vtanh.pop %v1024
        %v1029 = vtanh.pop %v1025
        %v1030 = vmul.f32 %v583, %v1026
        %v1031 = vmul.f32 %v583, %v1027
        %v1032 = vmul.f32 %v583, %v1028
        %v1033 = vmul.f32 %v583, %v1029
        %v1034 = vadd.f32 %v1022, %v1030
        %v1035 = vadd.f32 %v1023, %v1031
        %v1036 = vadd.f32 %v1024, %v1032
        %v1037 = vadd.f32 %v1025, %v1033
        %v1038 = vmul.f32 %v592, %v962
        %v1039 = vmul.f32 %v592, %v963
        %v1040 = vmul.f32 %v592, %v964
        %v1041 = vmul.f32 %v592, %v965
        %v1042 = vmul.f32 %v597, %v998
        %v1043 = vmul.f32 %v597, %v999
        %v1044 = vmul.f32 %v597, %v1000
        %v1045 = vmul.f32 %v597, %v1001
        %v1046 = vadd.f32 %v1038, %v1042
        %v1047 = vadd.f32 %v1039, %v1043
        %v1048 = vadd.f32 %v1040, %v1044
        %v1049 = vadd.f32 %v1041, %v1045
        %v1050 = vmul.f32 %v606, %v1034
        %v1051 = vmul.f32 %v606, %v1035
        %v1052 = vmul.f32 %v606, %v1036
        %v1053 = vmul.f32 %v606, %v1037
        %v1054 = vadd.f32 %v1046, %v1050
        %v1055 = vadd.f32 %v1047, %v1051
        %v1056 = vadd.f32 %v1048, %v1052
        %v1057 = vadd.f32 %v1049, %v1053
        %v1058 = vadd.f32 %v1054, %v615
        %v1059 = vadd.f32 %v1055, %v615
        %v1060 = vadd.f32 %v1056, %v615
        %v1061 = vadd.f32 %v1057, %v615
        %v1062 = vtanh.pop %v1058
        %v1063 = vtanh.pop %v1059
        %v1064 = vtanh.pop %v1060
        %v1065 = vtanh.pop %v1061
        %v1066 = vmul.f32 %v624, %v1062
        %v1067 = vmul.f32 %v624, %v1063
        %v1068 = vmul.f32 %v624, %v1064
        %v1069 = vmul.f32 %v624, %v1065
        %v1070 = vadd.f32 %v1058, %v1066
        %v1071 = vadd.f32 %v1059, %v1067
        %v1072 = vadd.f32 %v1060, %v1068
        %v1073 = vadd.f32 %v1061, %v1069
        %v1074 = vmul.f32 %v633, %v962
        %v1075 = vmul.f32 %v633, %v963
        %v1076 = vmul.f32 %v633, %v964
        %v1077 = vmul.f32 %v633, %v965
        %v1078 = vmul.f32 %v638, %v998
        %v1079 = vmul.f32 %v638, %v999
        %v1080 = vmul.f32 %v638, %v1000
        %v1081 = vmul.f32 %v638, %v1001
        %v1082 = vadd.f32 %v1074, %v1078
        %v1083 = vadd.f32 %v1075, %v1079
        %v1084 = vadd.f32 %v1076, %v1080
        %v1085 = vadd.f32 %v1077, %v1081
        %v1086 = vmul.f32 %v647, %v1034
        %v1087 = vmul.f32 %v647, %v1035
        %v1088 = vmul.f32 %v647, %v1036
        %v1089 = vmul.f32 %v647, %v1037
        %v1090 = vadd.f32 %v1082, %v1086
        %v1091 = vadd.f32 %v1083, %v1087
        %v1092 = vadd.f32 %v1084, %v1088
        %v1093 = vadd.f32 %v1085, %v1089
        %v1094 = vadd.f32 %v1090, %v656
        %v1095 = vadd.f32 %v1091, %v656
        %v1096 = vadd.f32 %v1092, %v656
        %v1097 = vadd.f32 %v1093, %v656
        %v1098 = vtanh.pop %v1094
        %v1099 = vtanh.pop %v1095
        %v1100 = vtanh.pop %v1096
        %v1101 = vtanh.pop %v1097
        %v1102 = vmul.f32 %v665, %v1098
        %v1103 = vmul.f32 %v665, %v1099
        %v1104 = vmul.f32 %v665, %v1100
        %v1105 = vmul.f32 %v665, %v1101
        %v1106 = vadd.f32 %v1094, %v1102
        %v1107 = vadd.f32 %v1095, %v1103
        %v1108 = vadd.f32 %v1096, %v1104
        %v1109 = vadd.f32 %v1097, %v1105
        %v1110 = vmul.f32 %v674, %v962
        %v1111 = vmul.f32 %v674, %v963
        %v1112 = vmul.f32 %v674, %v964
        %v1113 = vmul.f32 %v674, %v965
        %v1114 = vmul.f32 %v679, %v998
        %v1115 = vmul.f32 %v679, %v999
        %v1116 = vmul.f32 %v679, %v1000
        %v1117 = vmul.f32 %v679, %v1001
        %v1118 = vadd.f32 %v1110, %v1114
        %v1119 = vadd.f32 %v1111, %v1115
        %v1120 = vadd.f32 %v1112, %v1116
        %v1121 = vadd.f32 %v1113, %v1117
        %v1122 = vmul.f32 %v688, %v1034
        %v1123 = vmul.f32 %v688, %v1035
        %v1124 = vmul.f32 %v688, %v1036
        %v1125 = vmul.f32 %v688, %v1037
        %v1126 = vadd.f32 %v1118, %v1122
        %v1127 = vadd.f32 %v1119, %v1123
        %v1128 = vadd.f32 %v1120, %v1124
        %v1129 = vadd.f32 %v1121, %v1125
        %v1130 = vadd.f32 %v1126, %v697
        %v1131 = vadd.f32 %v1127, %v697
        %v1132 = vadd.f32 %v1128, %v697
        %v1133 = vadd.f32 %v1129, %v697
        %v1134 = vtanh.pop %v1130
        %v1135 = vtanh.pop %v1131
        %v1136 = vtanh.pop %v1132
        %v1137 = vtanh.pop %v1133
        %v1138 = vmul.f32 %v706, %v1134
        %v1139 = vmul.f32 %v706, %v1135
        %v1140 = vmul.f32 %v706, %v1136
        %v1141 = vmul.f32 %v706, %v1137
        %v1142 = vadd.f32 %v1130, %v1138
        %v1143 = vadd.f32 %v1131, %v1139
        %v1144 = vadd.f32 %v1132, %v1140
        %v1145 = vadd.f32 %v1133, %v1141
        %v1146 = vmul.f32 %v715, %v1070
        %v1147 = vmul.f32 %v715, %v1071
        %v1148 = vmul.f32 %v715, %v1072
        %v1149 = vmul.f32 %v715, %v1073
        %v1150 = vmul.f32 %v720, %v1106
        %v1151 = vmul.f32 %v720, %v1107
        %v1152 = vmul.f32 %v720, %v1108
        %v1153 = vmul.f32 %v720, %v1109
        %v1154 = vadd.f32 %v1146, %v1150
        %v1155 = vadd.f32 %v1147, %v1151
        %v1156 = vadd.f32 %v1148, %v1152
        %v1157 = vadd.f32 %v1149, %v1153
        %v1158 = vmul.f32 %v729, %v1142
        %v1159 = vmul.f32 %v729, %v1143
        %v1160 = vmul.f32 %v729, %v1144
        %v1161 = vmul.f32 %v729, %v1145
        %v1162 = vadd.f32 %v1154, %v1158
        %v1163 = vadd.f32 %v1155, %v1159
        %v1164 = vadd.f32 %v1156, %v1160
        %v1165 = vadd.f32 %v1157, %v1161
        %v1166 = vadd.f32 %v1162, %v738
        %v1167 = vadd.f32 %v1163, %v738
        %v1168 = vadd.f32 %v1164, %v738
        %v1169 = vadd.f32 %v1165, %v738
        %v1170 = vtanh.pop %v1166
        %v1171 = vtanh.pop %v1167
        %v1172 = vtanh.pop %v1168
        %v1173 = vtanh.pop %v1169
        %v1174 = vmul.f32 %v747, %v1170
        %v1175 = vmul.f32 %v747, %v1171
        %v1176 = vmul.f32 %v747, %v1172
        %v1177 = vmul.f32 %v747, %v1173
        %v1178 = vadd.f32 %v1166, %v1174
        %v1179 = vadd.f32 %v1167, %v1175
        %v1180 = vadd.f32 %v1168, %v1176
        %v1181 = vadd.f32 %v1169, %v1177
        %v1182 = vmul.f32 %v756, %v1070
        %v1183 = vmul.f32 %v756, %v1071
        %v1184 = vmul.f32 %v756, %v1072
        %v1185 = vmul.f32 %v756, %v1073
        %v1186 = vmul.f32 %v761, %v1106
        %v1187 = vmul.f32 %v761, %v1107
        %v1188 = vmul.f32 %v761, %v1108
        %v1189 = vmul.f32 %v761, %v1109
        %v1190 = vadd.f32 %v1182, %v1186
        %v1191 = vadd.f32 %v1183, %v1187
        %v1192 = vadd.f32 %v1184, %v1188
        %v1193 = vadd.f32 %v1185, %v1189
        %v1194 = vmul.f32 %v770, %v1142
        %v1195 = vmul.f32 %v770, %v1143
        %v1196 = vmul.f32 %v770, %v1144
        %v1197 = vmul.f32 %v770, %v1145
        %v1198 = vadd.f32 %v1190, %v1194
        %v1199 = vadd.f32 %v1191, %v1195
        %v1200 = vadd.f32 %v1192, %v1196
        %v1201 = vadd.f32 %v1193, %v1197
        %v1202 = vadd.f32 %v1198, %v779
        %v1203 = vadd.f32 %v1199, %v779
        %v1204 = vadd.f32 %v1200, %v779
        %v1205 = vadd.f32 %v1201, %v779
        %v1206 = vtanh.pop %v1202
        %v1207 = vtanh.pop %v1203
        %v1208 = vtanh.pop %v1204
        %v1209 = vtanh.pop %v1205
        %v1210 = vmul.f32 %v788, %v1206
        %v1211 = vmul.f32 %v788, %v1207
        %v1212 = vmul.f32 %v788, %v1208
        %v1213 = vmul.f32 %v788, %v1209
        %v1214 = vadd.f32 %v1202, %v1210
        %v1215 = vadd.f32 %v1203, %v1211
        %v1216 = vadd.f32 %v1204, %v1212
        %v1217 = vadd.f32 %v1205, %v1213
        %v1218 = vmul.f32 %v797, %v1070
        %v1219 = vmul.f32 %v797, %v1071
        %v1220 = vmul.f32 %v797, %v1072
        %v1221 = vmul.f32 %v797, %v1073
        %v1222 = vmul.f32 %v802, %v1106
        %v1223 = vmul.f32 %v802, %v1107
        %v1224 = vmul.f32 %v802, %v1108
        %v1225 = vmul.f32 %v802, %v1109
        %v1226 = vadd.f32 %v1218, %v1222
        %v1227 = vadd.f32 %v1219, %v1223
        %v1228 = vadd.f32 %v1220, %v1224
        %v1229 = vadd.f32 %v1221, %v1225
        %v1230 = vmul.f32 %v811, %v1142
        %v1231 = vmul.f32 %v811, %v1143
        %v1232 = vmul.f32 %v811, %v1144
        %v1233 = vmul.f32 %v811, %v1145
        %v1234 = vadd.f32 %v1226, %v1230
        %v1235 = vadd.f32 %v1227, %v1231
        %v1236 = vadd.f32 %v1228, %v1232
        %v1237 = vadd.f32 %v1229, %v1233
        %v1238 = vadd.f32 %v1234, %v820
        %v1239 = vadd.f32 %v1235, %v820
        %v1240 = vadd.f32 %v1236, %v820
        %v1241 = vadd.f32 %v1237, %v820
        %v1242 = vtanh.pop %v1238
        %v1243 = vtanh.pop %v1239
        %v1244 = vtanh.pop %v1240
        %v1245 = vtanh.pop %v1241
        %v1246 = vmul.f32 %v829, %v1242
        %v1247 = vmul.f32 %v829, %v1243
        %v1248 = vmul.f32 %v829, %v1244
        %v1249 = vmul.f32 %v829, %v1245
        %v1250 = vadd.f32 %v1238, %v1246
        %v1251 = vadd.f32 %v1239, %v1247
        %v1252 = vadd.f32 %v1240, %v1248
        %v1253 = vadd.f32 %v1241, %v1249
        %v1254 = vmul.f32 %v838, %v1178
        %v1255 = vmul.f32 %v838, %v1179
        %v1256 = vmul.f32 %v838, %v1180
        %v1257 = vmul.f32 %v838, %v1181
        %v1258 = vmul.f32 %v843, %v1214
        %v1259 = vmul.f32 %v843, %v1215
        %v1260 = vmul.f32 %v843, %v1216
        %v1261 = vmul.f32 %v843, %v1217
        %v1262 = vadd.f32 %v1254, %v1258
        %v1263 = vadd.f32 %v1255, %v1259
        %v1264 = vadd.f32 %v1256, %v1260
        %v1265 = vadd.f32 %v1257, %v1261
        %v1266 = vmul.f32 %v852, %v1250
        %v1267 = vmul.f32 %v852, %v1251
        %v1268 = vmul.f32 %v852, %v1252
        %v1269 = vmul.f32 %v852, %v1253
        %v1270 = vadd.f32 %v1262, %v1266
        %v1271 = vadd.f32 %v1263, %v1267
        %v1272 = vadd.f32 %v1264, %v1268
        %v1273 = vadd.f32 %v1265, %v1269
        %v1274 = vadd.f32 %v1270, %v861
        %v1275 = vadd.f32 %v1271, %v861
        %v1276 = vadd.f32 %v1272, %v861
        %v1277 = vadd.f32 %v1273, %v861
        %v1278 = vxor.u32 %v1274, 2147483648
        %v1279 = vxor.u32 %v1275, 2147483648
        %v1280 = vxor.u32 %v1276, 2147483648
        %v1281 = vxor.u32 %v1277, 2147483648
        %v1282 = vmul.f32 %v1278, 1.442695
        %v1283 = vpow.pop %v1282
        %v1284 = vmul.f32 %v1279, 1.442695
        %v1285 = vpow.pop %v1284
        %v1286 = vmul.f32 %v1280, 1.442695
        %v1287 = vpow.pop %v1286
        %v1288 = vmul.f32 %v1281, 1.442695
        %v1289 = vpow.pop %v1288
        %v1290 = vadd.f32 %v1283, 1.0
        %v1291 = vadd.f32 %v1285, 1.0
        %v1292 = vadd.f32 %v1287, 1.0
        %v1293 = vadd.f32 %v1289, 1.0
        %v1294 = vrcp.pop %v1290
        %v1295 = vmul.f32 %v1290, %v1294
        %v1296 = vsub.f32 1.0, %v1295
        %v1297 = vmul.f32 %v1294, %v1296
        %v1298 = vadd.f32 %v1294, %v1297
        %vm1299 = vweird.f32 %v1290
        %vm1300 = vweird.f32 %v1294
        %vm1301 = vmor %vm1299, %vm1300
        %v1302 = vsel %vm1301, %v1294, %v1298
        %v1303 = vand.u32 2147483647, %v1290
        %vm1304 = vcmp.eq.f32.partialorder %v1303, 8.507059e+37
        %v1305 = vand.u32 %v1290, 2147483648
        %v1306 = vor.u32 1.1754944e-38, %v1305
        %v1307 = vsel %vm1304, %v1306, %v1302
        %v1308 = vmul.f32 1.0, %v1307
        %v1309 = vrcp.pop %v1291
        %v1310 = vmul.f32 %v1291, %v1309
        %v1311 = vsub.f32 1.0, %v1310
        %v1312 = vmul.f32 %v1309, %v1311
        %v1313 = vadd.f32 %v1309, %v1312
        %vm1314 = vweird.f32 %v1291
        %vm1315 = vweird.f32 %v1309
        %vm1316 = vmor %vm1314, %vm1315
        %v1317 = vsel %vm1316, %v1309, %v1313
        %v1318 = vand.u32 2147483647, %v1291
        %vm1319 = vcmp.eq.f32.partialorder %v1318, 8.507059e+37
        %v1320 = vand.u32 %v1291, 2147483648
        %v1321 = vor.u32 1.1754944e-38, %v1320
        %v1322 = vsel %vm1319, %v1321, %v1317
        %v1323 = vmul.f32 1.0, %v1322
        %v1324 = vrcp.pop %v1292
        %v1325 = vmul.f32 %v1292, %v1324
        %v1326 = vsub.f32 1.0, %v1325
        %v1327 = vmul.f32 %v1324, %v1326
        %v1328 = vadd.f32 %v1324, %v1327
        %vm1329 = vweird.f32 %v1292
        %vm1330 = vweird.f32 %v1324
        %vm1331 = vmor %vm1329, %vm1330
        %v1332 = vsel %vm1331, %v1324, %v1328
        %v1333 = vand.u32 2147483647, %v1292
        %vm1334 = vcmp.eq.f32.partialorder %v1333, 8.507059e+37
        %v1335 = vand.u32 %v1292, 2147483648
        %v1336 = vor.u32 1.1754944e-38, %v1335
        %v1337 = vsel %vm1334, %v1336, %v1332
        %v1338 = vmul.f32 1.0, %v1337
        %v1339 = vrcp.pop %v1293
        %v1340 = vmul.f32 %v1293, %v1339
        %v1341 = vsub.f32 1.0, %v1340
        %v1342 = vmul.f32 %v1339, %v1341
        %v1343 = vadd.f32 %v1339, %v1342
        %vm1344 = vweird.f32 %v1293
        %vm1345 = vweird.f32 %v1339
        %vm1346 = vmor %vm1344, %vm1345
        %v1347 = vsel %vm1346, %v1339, %v1343
        %v1348 = vand.u32 2147483647, %v1293
        %vm1349 = vcmp.eq.f32.partialorder %v1348, 8.507059e+37
        %v1350 = vand.u32 %v1293, 2147483648
        %v1351 = vor.u32 1.1754944e-38, %v1350
        %v1352 = vsel %vm1349, %v1351, %v1347
        %v1353 = vmul.f32 1.0, %v1352
        %v1354 = vxor.u32 %v862, 2147483648
        %v1355 = vxor.u32 %v863, 2147483648
        %v1356 = vxor.u32 %v864, 2147483648
        %v1357 = vxor.u32 %v865, 2147483648
        %v1358 = vmul.f32 %v1354, 1.442695
        %v1359 = vpow.pop %v1358
        %v1360 = vmul.f32 %v1355, 1.442695
        %v1361 = vpow.pop %v1360
        %v1362 = vmul.f32 %v1356, 1.442695
        %v1363 = vpow.pop %v1362
        %v1364 = vmul.f32 %v1357, 1.442695
        %v1365 = vpow.pop %v1364
        %v1366 = vadd.f32 %v1359, 1.0
        %v1367 = vadd.f32 %v1361, 1.0
        %v1368 = vadd.f32 %v1363, 1.0
        %v1369 = vadd.f32 %v1365, 1.0
        %v1370 = vrcp.pop %v1366
        %v1371 = vmul.f32 %v1366, %v1370
        %v1372 = vsub.f32 1.0, %v1371
        %v1373 = vmul.f32 %v1370, %v1372
        %v1374 = vadd.f32 %v1370, %v1373
        %vm1375 = vweird.f32 %v1366
        %vm1376 = vweird.f32 %v1370
        %vm1377 = vmor %vm1375, %vm1376
        %v1378 = vsel %vm1377, %v1370, %v1374
        %v1379 = vand.u32 2147483647, %v1366
        %vm1380 = vcmp.eq.f32.partialorder %v1379, 8.507059e+37
        %v1381 = vand.u32 %v1366, 2147483648
        %v1382 = vor.u32 1.1754944e-38, %v1381
        %v1383 = vsel %vm1380, %v1382, %v1378
        %v1384 = vmul.f32 1.0, %v1383
        %v1385 = vrcp.pop %v1367
        %v1386 = vmul.f32 %v1367, %v1385
        %v1387 = vsub.f32 1.0, %v1386
        %v1388 = vmul.f32 %v1385, %v1387
        %v1389 = vadd.f32 %v1385, %v1388
        %vm1390 = vweird.f32 %v1367
        %vm1391 = vweird.f32 %v1385
        %vm1392 = vmor %vm1390, %vm1391
        %v1393 = vsel %vm1392, %v1385, %v1389
        %v1394 = vand.u32 2147483647, %v1367
        %vm1395 = vcmp.eq.f32.partialorder %v1394, 8.507059e+37
        %v1396 = vand.u32 %v1367, 2147483648
        %v1397 = vor.u32 1.1754944e-38, %v1396
        %v1398 = vsel %vm1395, %v1397, %v1393
        %v1399 = vmul.f32 1.0, %v1398
        %v1400 = vrcp.pop %v1368
        %v1401 = vmul.f32 %v1368, %v1400
        %v1402 = vsub.f32 1.0, %v1401
        %v1403 = vmul.f32 %v1400, %v1402
        %v1404 = vadd.f32 %v1400, %v1403
        %vm1405 = vweird.f32 %v1368
        %vm1406 = vweird.f32 %v1400
        %vm1407 = vmor %vm1405, %vm1406
        %v1408 = vsel %vm1407, %v1400, %v1404
        %v1409 = vand.u32 2147483647, %v1368
        %vm1410 = vcmp.eq.f32.partialorder %v1409, 8.507059e+37
        %v1411 = vand.u32 %v1368, 2147483648
        %v1412 = vor.u32 1.1754944e-38, %v1411
        %v1413 = vsel %vm1410, %v1412, %v1408
        %v1414 = vmul.f32 1.0, %v1413
        %v1415 = vrcp.pop %v1369
        %v1416 = vmul.f32 %v1369, %v1415
        %v1417 = vsub.f32 1.0, %v1416
        %v1418 = vmul.f32 %v1415, %v1417
        %v1419 = vadd.f32 %v1415, %v1418
        %vm1420 = vweird.f32 %v1369
        %vm1421 = vweird.f32 %v1415
        %vm1422 = vmor %vm1420, %vm1421
        %v1423 = vsel %vm1422, %v1415, %v1419
        %v1424 = vand.u32 2147483647, %v1369
        %vm1425 = vcmp.eq.f32.partialorder %v1424, 8.507059e+37
        %v1426 = vand.u32 %v1369, 2147483648
        %v1427 = vor.u32 1.1754944e-38, %v1426
        %v1428 = vsel %vm1425, %v1427, %v1423
        %v1429 = vmul.f32 1.0, %v1428
        %v1430 = vsub.f32 %v1308, %v1384
        %v1431 = vsub.f32 %v1323, %v1399
        %v1432 = vsub.f32 %v1338, %v1414
        %v1433 = vsub.f32 %v1353, %v1429
        %v1434 = vmax.f32 %v1430, 1e-09
        %v1435 = vmax.f32 %v1431, 1e-09
        %v1436 = vmax.f32 %v1432, 1e-09
        %v1437 = vmax.f32 %v1433, 1e-09
        %1438 = vst [vmem:[%s248] sm:$0xff] %v1434
        %1439 = vst [vmem:[%s248 + $0x8] sm:$0xff] %v1435
        %1440 = vst [vmem:[%s248 + $0x10] sm:$0xff] %v1436
        %1441 = vst [vmem:[%s248 + $0x18] sm:$0xff] %v1437
        %s1442 = sand.u32 %s107, 1
        %s1443 = scalar_lea.sflag [#allocation4], %s1442
        %s1444 = sand.u32 %s107, 1
        %s1445 = smul.addr %s1444, 32
        %s1446 = scalar_lea.vmem [#allocation7], %s1445
        %s1447 = sand.u32 %s137, 1
        %s1448 = scalar_lea.sflag [#allocation9], %s1447
        %s1449 = sand.u32 %s137, 1
        %s1450 = smul.addr %s1449, 32
        %s1451 = scalar_lea.vmem [#allocation8], %s1450
        // Predicated region
        $region37: #{tpu_custom_call.1} parent=27 // pred_check
          %p1452 = pneg %p117
        $region38: #{tpu_custom_call.1} parent=27 // pred_check_branch
          %1454 = sbr.rel (%p1452) target = $region40
        $region39: #{tpu_custom_call.1} parent=27 // pred_region
          %1456 = vsyncadd %s1443, 0
          %s1457 = smul.addr %s32, 4
          %s1458 = smul.addr %s31, 4
          %s1459 = sadd.s32 %s1457, %s1458
          %s1460 = smul.addr %s30, 16
          %s1461 = sadd.s32 %s1459, %s1460
          %s1462 = smul.addr %s1461, 8
          %s1463 = scalar_lea.hbm %s2, %s1462
          %s1465 = sshll.u32 %s1446, 4
          %s1466 = int_to_ptr.vmem [resolvable:$true] %s1465
          %s1467 = sshll.u32 %s1463, 4
          %s1468 = int_to_ptr.hbm [resolvable:$true] %s1467
          %1470 = dma.vmem_to_hbm [thread:$0]  %s1466, 512, %s1468, %s1443
        $region40: #{tpu_custom_call.1} parent=27 // pred_fallthru
          _
        // Predicated region
        $region41: #{tpu_custom_call.1} parent=27 // pred_check
          %p1471 = pneg %p147
        $region42: #{tpu_custom_call.1} parent=27 // pred_check_branch
          %1473 = sbr.rel (%p1471) target = $region44
        $region43: #{tpu_custom_call.1} parent=27 // pred_region
          %1475 = vsyncadd %s1448, 0
          %s1476 = smul.addr %s32, 4
          %s1477 = smul.addr %s31, 4
          %s1478 = sadd.s32 %s1476, %s1477
          %s1479 = smul.addr %s30, 16
          %s1480 = sadd.s32 %s1478, %s1479
          %s1481 = smul.addr %s1480, 8
          %s1482 = scalar_lea.hbm %s3, %s1481
          %s1484 = sshll.u32 %s1451, 4
          %s1485 = int_to_ptr.vmem [resolvable:$true] %s1484
          %s1486 = sshll.u32 %s1482, 4
          %s1487 = int_to_ptr.hbm [resolvable:$true] %s1486
          %1489 = dma.vmem_to_hbm [thread:$0]  %s1485, 512, %s1487, %s1448
        $region44: #{tpu_custom_call.1} parent=27 // pred_fallthru
          _
      $region28: #{tpu_custom_call.1} parent=5 // pred_fallthru
        _
      %p1490 = scmp.le.s32.totalorder 2, %s20
      // Predicated region
      $region45: #{tpu_custom_call.1} parent=5 // pred_check
        %p1491 = pneg %p1490
      $region46: #{tpu_custom_call.1} parent=5 // pred_check_branch
        %1493 = sbr.rel (%p1491) target = $region48
      $region47: #{tpu_custom_call.1} parent=5 // pred_region
        %s1494 = ssub.s32 %s20, 2
        // Predicated region
        $region49: #{tpu_custom_call.1} parent=47 // pred_check
          %p1495 = pneg %p123
        $region50: #{tpu_custom_call.1} parent=47 // pred_check_branch
          %1497 = sbr.rel (%p1495) target = $region52
        $region51: #{tpu_custom_call.1} parent=47 // pred_region
          %s1498 = sand.u32 %s108, 1
          %s1499 = scalar_lea.sflag [#allocation4], %s1498
          %s1500 = sand.u32 %s108, 1
          %s1501 = smul.addr %s1500, 32
          %s1502 = scalar_lea.vmem [#allocation7], %s1501
          %1504 = dma.done %s1499, 512
        $region52: #{tpu_custom_call.1} parent=47 // pred_fallthru
          _
        // Predicated region
        $region53: #{tpu_custom_call.1} parent=47 // pred_check
          %p1505 = pneg %p153
        $region54: #{tpu_custom_call.1} parent=47 // pred_check_branch
          %1507 = sbr.rel (%p1505) target = $region56
        $region55: #{tpu_custom_call.1} parent=47 // pred_region
          %s1508 = sand.u32 %s138, 1
          %s1509 = scalar_lea.sflag [#allocation9], %s1508
          %s1510 = sand.u32 %s138, 1
          %s1511 = smul.addr %s1510, 32
          %s1512 = scalar_lea.vmem [#allocation8], %s1511
          %1514 = dma.done %s1509, 512
        $region56: #{tpu_custom_call.1} parent=47 // pred_fallthru
          _
      $region48: #{tpu_custom_call.1} parent=5 // pred_fallthru
        _
    $region6: #{tpu_custom_call.1} parent=1 // loop_footer
      %s24 = sadd.s32 1, %s20
    $region7: #{tpu_custom_call.1} parent=1 // loop_footer_branch
      %19 = sbr.rel target = $region3
    $region8: #{tpu_custom_call.1} parent=1 // loop_exit
      _
    %1515 = vsyncpa [#allocation3], 1
    %s1516 = scalar_lea.sflag [#allocation3], 1
    %1517 = vsyncpa %s1516, 1
    %1518 = vsyncpa [#allocation4], 1
    %s1519 = scalar_lea.sflag [#allocation4], 1
    %1520 = vsyncpa %s1519, 1
    %1521 = vsyncpa [#allocation9], 1
    %s1522 = scalar_lea.sflag [#allocation9], 1
    %1523 = vsyncpa %s1522, 1
    %1524 = vsyncpa [#allocation5], 1
    %s1525 = scalar_lea.sflag [#allocation5], 1
    %1526 = vsyncpa %s1525, 1

</llo_original>
